<compile_context>
chip_gen: v7x
topology: tpu7x:2x2x1
jax: 0.10.0
libtpu: 0.0.40
codegen_flags: <defaults>
</compile_context>

<pallas_src>
import jax
import jax.numpy as jnp
from jax.experimental import pallas as pl
from jax.experimental.pallas import tpu as pltpu


# Logical feature dims (match the PyTorch module) and lane-padded hidden dims.
D_IN, H1, H2, D_OUT = 784, 250, 50, 784
H1_P, H2_P = 256, 128  # hidden dims padded to 128-lane multiples


def _round_up(n, m):
    return ((n + m - 1) // m) * m


def autoenc_kernel(x_ref,
                   w1_ref, b1_ref,
                   w2_ref, b2_ref,
                   w3_ref, b3_ref,
                   w4_ref, b4_ref,
                   o_ref):
    """One batch tile of the whole network.

    x_ref: (tile_b, 784) f32 (cast to bf16 in-kernel).
    Weights: bf16, (in, out) oriented; hidden dims zero-padded to 128
    multiples, but K=784 / N=784 edges are kept at 784.
    Biases: (1, out) f32.  MXU matmuls accumulate in f32; bias/ReLU stay f32.
    """
    x = x_ref[...].astype(jnp.bfloat16)

    # layer 1: 784 -> 250(+pad), ReLU
    h = jnp.dot(x, w1_ref[...],
                preferred_element_type=jnp.float32) + b1_ref[...]
    h = jnp.maximum(h, 0.0).astype(jnp.bfloat16)

    # layer 2 (enc): 250 -> 50(+pad), ReLU
    h = jnp.dot(h, w2_ref[...],
                preferred_element_type=jnp.float32) + b2_ref[...]
    h = jnp.maximum(h, 0.0).astype(jnp.bfloat16)

    # layer 3 (lat): 50 -> 250(+pad), ReLU
    h = jnp.dot(h, w3_ref[...],
                preferred_element_type=jnp.float32) + b3_ref[...]
    h = jnp.maximum(h, 0.0).astype(jnp.bfloat16)

    # layer 4 (dec): 250 -> 784, sigmoid (EUP exp + approx reciprocal)
    h = jnp.dot(h, w4_ref[...],
                preferred_element_type=jnp.float32) + b4_ref[...]
    o_ref[...] = pl.reciprocal(1.0 + jnp.exp(-h),
                               approx=True).astype(o_ref.dtype)


def _pad2(a, rows, cols, dtype):
    """Zero-pad a 2-D array to (rows, cols) and cast."""
    r, c = a.shape
    return jnp.pad(a, ((0, rows - r), (0, cols - c))).astype(dtype)


def prepare_params(params):
    """One-time weight/bias layout prep (pad hidden dims to 128, cast to bf16).

    Hoisted out of the per-call path so the forward pass adds no extra
    pad/cast HBM passes.  Weights are (in, out) oriented.
    """
    return {
        "w1": _pad2(params["w1"], D_IN, H1_P, jnp.bfloat16),   # (784, 256)
        "b1": _pad2(params["b1"], 1, H1_P, jnp.float32),
        "w2": _pad2(params["w2"], H1_P, H2_P, jnp.bfloat16),   # (256, 128)
        "b2": _pad2(params["b2"], 1, H2_P, jnp.float32),
        "w3": _pad2(params["w3"], H2_P, H1_P, jnp.bfloat16),   # (128, 256)
        "b3": _pad2(params["b3"], 1, H1_P, jnp.float32),
        "w4": _pad2(params["w4"], H1_P, D_OUT, jnp.bfloat16),  # (256, 784)
        "b4": _pad2(params["b4"], 1, D_OUT, jnp.float32),
    }


def _choose_tiling(B):
    """Pick (tile_b, b_pad): tile_b multiple of 16 (8 for tiny B), <=512 rows,
    and an even number (>=2) of grid steps for B >= 32 so v7x megacore gets
    both TensorCores busy with balanced work; padding waste stays small."""
    if B <= 16:
        t = _round_up(B, 8)
        return t, t
    b16 = _round_up(B, 16)
    if b16 < 32:
        return b16, b16
    steps = max(2, pl.cdiv(b16, 512))
    if steps % 2:
        steps += 1
    tile_b = _round_up(pl.cdiv(b16, steps), 16)
    return tile_b, tile_b * steps


def autoenc_mnist_forward(x, prepped, out_dtype=jnp.float32):
    """x: (B, 784) f32.  prepped: output of prepare_params().

    Returns (B, 784) `out_dtype` (default f32), same semantics as the PyTorch
    module up to bf16 MXU precision.
    """
    B = x.shape[0]
    tile_b, b_pad = _choose_tiling(B)
    grid = (b_pad // tile_b,)

    x = x.astype(jnp.float32)
    if b_pad != B:  # only ragged batches pay a (row-only) pad copy
        x = jnp.pad(x, ((0, b_pad - B), (0, 0)))

    w1, b1 = prepped["w1"], prepped["b1"]
    w2, b2 = prepped["w2"], prepped["b2"]
    w3, b3 = prepped["w3"], prepped["b3"]
    w4, b4 = prepped["w4"], prepped["b4"]

    # Advisory cost estimate (padded shapes, what the kernel actually does).
    out_bytes = jnp.dtype(out_dtype).itemsize
    flops = 2 * b_pad * (D_IN * H1_P + H1_P * H2_P + H2_P * H1_P + H1_P * D_OUT)
    bytes_accessed = (
        b_pad * D_IN * 4                                  # f32 input
        + b_pad * D_OUT * out_bytes                       # output
        + (w1.size + w2.size + w3.size + w4.size) * 2     # bf16 weights
        + (b1.size + b2.size + b3.size + b4.size) * 4)    # f32 biases
    cost = pl.CostEstimate(flops=flops,
                           transcendentals=b_pad * D_OUT,
                           bytes_accessed=bytes_accessed)

    # Weights/biases: constant index_map -> VMEM-resident across batch steps.
    resident = lambda a: pl.BlockSpec(a.shape, lambda i: (0, 0))

    out = pl.pallas_call(
        autoenc_kernel,
        out_shape=jax.ShapeDtypeStruct((b_pad, D_OUT), out_dtype),
        grid_spec=pltpu.PrefetchScalarGridSpec(
            num_scalar_prefetch=0,
            grid=grid,
            in_specs=[pl.BlockSpec((tile_b, D_IN), lambda i: (i, 0)),
                      resident(w1), resident(b1),
                      resident(w2), resident(b2),
                      resident(w3), resident(b3),
                      resident(w4), resident(b4)],
            out_specs=pl.BlockSpec((tile_b, D_OUT), lambda i: (i, 0)),
        ),
        compiler_params=pltpu.CompilerParams(
            dimension_semantics=("parallel",)),  # v7x: shard batch over 2 TCs
        cost_estimate=cost,
    )(x, w1, b1, w2, b2, w3, b3, w4, b4)

    return out if b_pad == B else out[:B]


def init_params(key):
    """Deterministic init mimicking nn.Linear default (+/- 1/sqrt(fan_in)).

    Weights stored transposed: (in_features, out_features); biases (1, out)."""
    dims = [(D_IN, H1), (H1, H2), (H2, H1), (H1, D_OUT)]
    params = {}
    for i, (fan_in, fan_out) in enumerate(dims, start=1):
        key, kw, kb = jax.random.split(key, 3)
        bound = 1.0 / jnp.sqrt(jnp.float32(fan_in))
        params[f"w{i}"] = jax.random.uniform(
            kw, (fan_in, fan_out), jnp.float32, minval=-bound, maxval=bound)
        params[f"b{i}"] = jax.random.uniform(
            kb, (1, fan_out), jnp.float32, minval=-bound, maxval=bound)
    return params


def reference_forward(x, params):
    h = jnp.maximum(x @ params["w1"] + params["b1"], 0.0)
    h = jnp.maximum(h @ params["w2"] + params["b2"], 0.0)
    h = jnp.maximum(h @ params["w3"] + params["b3"], 0.0)
    return jax.nn.sigmoid(h @ params["w4"] + params["b4"])


if __name__ == "__main__":
    key = jax.random.PRNGKey(0)
    key, kx = jax.random.split(key)

    B = 8
    x = jax.random.uniform(kx, (B, D_IN), jnp.float32)  # MNIST-like flattened
    params = init_params(key)
    prepped = prepare_params(params)  # one-time layout prep, outside hot path

    out = autoenc_mnist_forward(x, prepped)
    out = jax.block_until_ready(out)

    ref = reference_forward(x, params)
    assert out.shape == (B, D_OUT), out.shape
    assert out.dtype == jnp.float32, out.dtype
    # bf16 MXU operands -> loosened tolerance vs. the f32 reference.
    assert jnp.allclose(out, ref, atol=2e-2, rtol=2e-2), "mismatch vs reference"

    print("KERNEL_OK")
</pallas_src>

<mosaic_0001>
module attributes {stable_mosaic.version = 11 : i64} {
  func.func @autoenc_kernel(%arg0: i32, %arg1: memref<8x784xf32, #tpu.memory_space<vmem>>, %arg2: memref<784x256xbf16, #tpu.memory_space<vmem>>, %arg3: memref<1x256xf32, #tpu.memory_space<vmem>>, %arg4: memref<256x128xbf16, #tpu.memory_space<vmem>>, %arg5: memref<1x128xf32, #tpu.memory_space<vmem>>, %arg6: memref<128x256xbf16, #tpu.memory_space<vmem>>, %arg7: memref<1x256xf32, #tpu.memory_space<vmem>>, %arg8: memref<256x784xbf16, #tpu.memory_space<vmem>>, %arg9: memref<1x784xf32, #tpu.memory_space<vmem>>, %arg10: memref<8x784xf32, #tpu.memory_space<vmem>>) attributes {dimension_semantics = [#tpu.dimension_semantics<parallel>], iteration_bounds = array<i64: 1>, scalar_prefetch = 0 : i64, scratch_operands = 0 : i64, tpu.core_type = #tpu.core_type<tc>, window_params = [{transform_indices = @transform_0, window_bounds = array<i64: 8, 784>}, {pipeline_mode = #tpu.pipeline_mode<synchronous>, transform_indices = @transform_1, window_bounds = array<i64: 784, 256>}, {pipeline_mode = #tpu.pipeline_mode<synchronous>, transform_indices = @transform_2, window_bounds = array<i64: 1, 256>}, {pipeline_mode = #tpu.pipeline_mode<synchronous>, transform_indices = @transform_3, window_bounds = array<i64: 256, 128>}, {pipeline_mode = #tpu.pipeline_mode<synchronous>, transform_indices = @transform_4, window_bounds = array<i64: 1, 128>}, {pipeline_mode = #tpu.pipeline_mode<synchronous>, transform_indices = @transform_5, window_bounds = array<i64: 128, 256>}, {pipeline_mode = #tpu.pipeline_mode<synchronous>, transform_indices = @transform_6, window_bounds = array<i64: 1, 256>}, {pipeline_mode = #tpu.pipeline_mode<synchronous>, transform_indices = @transform_7, window_bounds = array<i64: 256, 784>}, {pipeline_mode = #tpu.pipeline_mode<synchronous>, transform_indices = @transform_8, window_bounds = array<i64: 1, 784>}, {transform_indices = @transform_9, window_bounds = array<i64: 8, 784>}]} {
    %c0 = arith.constant 0 : index
    %c0_0 = arith.constant 0 : index
    %0 = vector.load %arg1[%c0, %c0_0] : memref<8x784xf32, #tpu.memory_space<vmem>>, vector<8x784xf32>
    %1 = arith.truncf %0 : vector<8x784xf32> to vector<8x784xbf16>
    %c0_1 = arith.constant 0 : index
    %c0_2 = arith.constant 0 : index
    %2 = vector.load %arg2[%c0_1, %c0_2] : memref<784x256xbf16, #tpu.memory_space<vmem>>, vector<784x256xbf16>
    %cst = arith.constant dense<0.000000e+00> : vector<8x256xf32>
    %3 = tpu.matmul %1, %2, %cst {dimension_numbers = #tpu.dot_dimension_numbers<[1], [0], [0], [1], [0, 0, 1, 1], [], []>} : vector<8x784xbf16>, vector<784x256xbf16>, vector<8x256xf32> -> vector<8x256xf32>
    %c0_3 = arith.constant 0 : index
    %c0_4 = arith.constant 0 : index
    %4 = vector.load %arg3[%c0_3, %c0_4] : memref<1x256xf32, #tpu.memory_space<vmem>>, vector<1x256xf32>
    %5 = vector.broadcast %4 : vector<1x256xf32> to vector<8x256xf32>
    %6 = arith.addf %3, %5 : vector<8x256xf32>
    %cst_5 = arith.constant 0.000000e+00 : f32
    %7 = vector.broadcast %cst_5 : f32 to vector<8x256xf32>
    %8 = arith.maximumf %6, %7 : vector<8x256xf32>
    %9 = arith.truncf %8 : vector<8x256xf32> to vector<8x256xbf16>
    %c0_6 = arith.constant 0 : index
    %c0_7 = arith.constant 0 : index
    %10 = vector.load %arg4[%c0_6, %c0_7] : memref<256x128xbf16, #tpu.memory_space<vmem>>, vector<256x128xbf16>
    %cst_8 = arith.constant dense<0.000000e+00> : vector<8x128xf32>
    %11 = tpu.matmul %9, %10, %cst_8 {dimension_numbers = #tpu.dot_dimension_numbers<[1], [0], [0], [1], [0, 0, 1, 1], [], []>} : vector<8x256xbf16>, vector<256x128xbf16>, vector<8x128xf32> -> vector<8x128xf32>
    %c0_9 = arith.constant 0 : index
    %c0_10 = arith.constant 0 : index
    %12 = vector.load %arg5[%c0_9, %c0_10] : memref<1x128xf32, #tpu.memory_space<vmem>>, vector<1x128xf32>
    %13 = vector.broadcast %12 : vector<1x128xf32> to vector<8x128xf32>
    %14 = arith.addf %11, %13 : vector<8x128xf32>
    %cst_11 = arith.constant 0.000000e+00 : f32
    %15 = vector.broadcast %cst_11 : f32 to vector<8x128xf32>
    %16 = arith.maximumf %14, %15 : vector<8x128xf32>
    %17 = arith.truncf %16 : vector<8x128xf32> to vector<8x128xbf16>
    %c0_12 = arith.constant 0 : index
    %c0_13 = arith.constant 0 : index
    %18 = vector.load %arg6[%c0_12, %c0_13] : memref<128x256xbf16, #tpu.memory_space<vmem>>, vector<128x256xbf16>
    %cst_14 = arith.constant dense<0.000000e+00> : vector<8x256xf32>
    %19 = tpu.matmul %17, %18, %cst_14 {dimension_numbers = #tpu.dot_dimension_numbers<[1], [0], [0], [1], [0, 0, 1, 1], [], []>} : vector<8x128xbf16>, vector<128x256xbf16>, vector<8x256xf32> -> vector<8x256xf32>
    %c0_15 = arith.constant 0 : index
    %c0_16 = arith.constant 0 : index
    %20 = vector.load %arg7[%c0_15, %c0_16] : memref<1x256xf32, #tpu.memory_space<vmem>>, vector<1x256xf32>
    %21 = vector.broadcast %20 : vector<1x256xf32> to vector<8x256xf32>
    %22 = arith.addf %19, %21 : vector<8x256xf32>
    %cst_17 = arith.constant 0.000000e+00 : f32
    %23 = vector.broadcast %cst_17 : f32 to vector<8x256xf32>
    %24 = arith.maximumf %22, %23 : vector<8x256xf32>
    %25 = arith.truncf %24 : vector<8x256xf32> to vector<8x256xbf16>
    %c0_18 = arith.constant 0 : index
    %c0_19 = arith.constant 0 : index
    %26 = vector.load %arg8[%c0_18, %c0_19] : memref<256x784xbf16, #tpu.memory_space<vmem>>, vector<256x784xbf16>
    %cst_20 = arith.constant dense<0.000000e+00> : vector<8x784xf32>
    %27 = tpu.matmul %25, %26, %cst_20 {dimension_numbers = #tpu.dot_dimension_numbers<[1], [0], [0], [1], [0, 0, 1, 1], [], []>} : vector<8x256xbf16>, vector<256x784xbf16>, vector<8x784xf32> -> vector<8x784xf32>
    %c0_21 = arith.constant 0 : index
    %c0_22 = arith.constant 0 : index
    %28 = vector.load %arg9[%c0_21, %c0_22] : memref<1x784xf32, #tpu.memory_space<vmem>>, vector<1x784xf32>
    %29 = vector.broadcast %28 : vector<1x784xf32> to vector<8x784xf32>
    %30 = arith.addf %27, %29 : vector<8x784xf32>
    %cst_23 = arith.constant 0.000000e+00 : f32
    %31 = vector.broadcast %cst_23 : f32 to vector<8x784xf32>
    %32 = arith.subf %31, %30 : vector<8x784xf32>
    %33 = math.exp %32 : vector<8x784xf32>
    %cst_24 = arith.constant 1.000000e+00 : f32
    %34 = vector.broadcast %cst_24 : f32 to vector<8x784xf32>
    %35 = arith.addf %34, %33 : vector<8x784xf32>
    %36 = tpu.reciprocal %35 {approx = true} : vector<8x784xf32> -> vector<8x784xf32>
    %c0_25 = arith.constant 0 : index
    %c0_26 = arith.constant 0 : index
    %37 = vector.load %arg10[%c0_25, %c0_26] : memref<8x784xf32, #tpu.memory_space<vmem>>, vector<8x784xf32>
    tpu.vector_store %arg10[%c0_25, %c0_26], %36 {strides = array<i32>} : memref<8x784xf32, #tpu.memory_space<vmem>>, vector<8x784xf32>,
    return
  }
  func.func @transform_0(%arg0: i32) -> (i32, i32) {
    %c0_i32 = arith.constant 0 : i32
    %c0_i32_0 = arith.constant 0 : i32
    return %arg0, %c0_i32 : i32, i32
  }
  func.func @transform_1(%arg0: i32) -> (i32, i32) {
    %c0_i32 = arith.constant 0 : i32
    %c0_i32_0 = arith.constant 0 : i32
    %c0_i32_1 = arith.constant 0 : i32
    return %c0_i32, %c0_i32_0 : i32, i32
  }
  func.func @transform_2(%arg0: i32) -> (i32, i32) {
    %c0_i32 = arith.constant 0 : i32
    %c0_i32_0 = arith.constant 0 : i32
    %c0_i32_1 = arith.constant 0 : i32
    return %c0_i32, %c0_i32_0 : i32, i32
  }
  func.func @transform_3(%arg0: i32) -> (i32, i32) {
    %c0_i32 = arith.constant 0 : i32
    %c0_i32_0 = arith.constant 0 : i32
    %c0_i32_1 = arith.constant 0 : i32
    return %c0_i32, %c0_i32_0 : i32, i32
  }
  func.func @transform_4(%arg0: i32) -> (i32, i32) {
    %c0_i32 = arith.constant 0 : i32
    %c0_i32_0 = arith.constant 0 : i32
    %c0_i32_1 = arith.constant 0 : i32
    return %c0_i32, %c0_i32_0 : i32, i32
  }
  func.func @transform_5(%arg0: i32) -> (i32, i32) {
    %c0_i32 = arith.constant 0 : i32
    %c0_i32_0 = arith.constant 0 : i32
    %c0_i32_1 = arith.constant 0 : i32
    return %c0_i32, %c0_i32_0 : i32, i32
  }
  func.func @transform_6(%arg0: i32) -> (i32, i32) {
    %c0_i32 = arith.constant 0 : i32
    %c0_i32_0 = arith.constant 0 : i32
    %c0_i32_1 = arith.constant 0 : i32
    return %c0_i32, %c0_i32_0 : i32, i32
  }
  func.func @transform_7(%arg0: i32) -> (i32, i32) {
    %c0_i32 = arith.constant 0 : i32
    %c0_i32_0 = arith.constant 0 : i32
    %c0_i32_1 = arith.constant 0 : i32
    return %c0_i32, %c0_i32_0 : i32, i32
  }
  func.func @transform_8(%arg0: i32) -> (i32, i32) {
    %c0_i32 = arith.constant 0 : i32
    %c0_i32_0 = arith.constant 0 : i32
    %c0_i32_1 = arith.constant 0 : i32
    return %c0_i32, %c0_i32_0 : i32, i32
  }
  func.func @transform_9(%arg0: i32) -> (i32, i32) {
    %c0_i32 = arith.constant 0 : i32
    %c0_i32_0 = arith.constant 0 : i32
    return %arg0, %c0_i32 : i32, i32
  }
}

</mosaic_0001>

<llo_original>
// kernel: tpu_custom_call.1
$region0: #{tpu_custom_call.1}
  #allocation0 [shape = 'u32[]', space=smem, size = 0x4, offset = 0x4, fixed_abs, tag = 'smem constant byte address 0x4 - core index']
  #allocation1 [shape = 'u32[144,128]{1,0:T(1,128)}', space=vmem, size = 0x12000, scoped, tag = 'internal scratch']
  %s0 = inlined_call_operand.vmem [shape: f32[8,784], index: 0, kind: input, shape index: {}]
  %s1 = inlined_call_operand.vmem [shape: bf16[784,256], index: 1, kind: input, shape index: {}]
  %s2 = inlined_call_operand.vmem [shape: f32[1,256], index: 2, kind: input, shape index: {}]
  %s3 = inlined_call_operand.vmem [shape: bf16[256,128], index: 3, kind: input, shape index: {}]
  %s4 = inlined_call_operand.vmem [shape: f32[1,128], index: 4, kind: input, shape index: {}]
  %s5 = inlined_call_operand.vmem [shape: bf16[128,256], index: 5, kind: input, shape index: {}]
  %s6 = inlined_call_operand.vmem [shape: f32[1,256], index: 6, kind: input, shape index: {}]
  %s7 = inlined_call_operand.vmem [shape: bf16[256,784], index: 7, kind: input, shape index: {}]
  %s8 = inlined_call_operand.vmem [shape: f32[1,784], index: 8, kind: input, shape index: {}]
  %s9 = inlined_call_operand.hbm [shape: f32[8,784], index: 9, kind: output, shape index: {}]
  %s10 = sld [smem:[#allocation0]]
  $region46: #{tpu_custom_call.1} parent=0
    _
  %s12 = ssub.s32 1, %s10
  %s13 = scalar_select 0, %s12, %s10
  $region1: #{tpu_custom_call.1} parent=0
    #allocation2 [shape = 'u8[28672]{0}', space=vmem, size = 0x7000, scoped, tag = 'output window, operand 0, single buffered']
    #allocation3 [shape = 's32[1]{0}', space=sflag, size = 0x4, scoped, tag = 'scoped memory for tpu_custom_call.1']
    %14 = vsyncpa [#allocation3], 0
    // Predicated region
    $region2: #{tpu_custom_call.1} parent=1 // pred_check
      _
    $region3: #{tpu_custom_call.1} parent=1 // pred_check_branch
      %16 = sbr.rel (0) target = $region5
    $region4: #{tpu_custom_call.1} parent=1 // pred_region
      _
    $region5: #{tpu_custom_call.1} parent=1 // pred_fallthru
      _
    // Predicated region
    $region6: #{tpu_custom_call.1} parent=1 // pred_check
      _
    $region7: #{tpu_custom_call.1} parent=1 // pred_check_branch
      %18 = sbr.rel (0) target = $region9
    $region8: #{tpu_custom_call.1} parent=1 // pred_region
      _
    $region9: #{tpu_custom_call.1} parent=1 // pred_fallthru
      _
    // Predicated region
    $region10: #{tpu_custom_call.1} parent=1 // pred_check
      _
    $region11: #{tpu_custom_call.1} parent=1 // pred_check_branch
      %20 = sbr.rel (0) target = $region13
    $region12: #{tpu_custom_call.1} parent=1 // pred_region
      _
    $region13: #{tpu_custom_call.1} parent=1 // pred_fallthru
      _
    // Predicated region
    $region14: #{tpu_custom_call.1} parent=1 // pred_check
      _
    $region15: #{tpu_custom_call.1} parent=1 // pred_check_branch
      %22 = sbr.rel (0) target = $region17
    $region16: #{tpu_custom_call.1} parent=1 // pred_region
      _
    $region17: #{tpu_custom_call.1} parent=1 // pred_fallthru
      _
    // Predicated region
    $region18: #{tpu_custom_call.1} parent=1 // pred_check
      _
    $region19: #{tpu_custom_call.1} parent=1 // pred_check_branch
      %24 = sbr.rel (0) target = $region21
    $region20: #{tpu_custom_call.1} parent=1 // pred_region
      _
    $region21: #{tpu_custom_call.1} parent=1 // pred_fallthru
      _
    // Predicated region
    $region22: #{tpu_custom_call.1} parent=1 // pred_check
      _
    $region23: #{tpu_custom_call.1} parent=1 // pred_check_branch
      %26 = sbr.rel (0) target = $region25
    $region24: #{tpu_custom_call.1} parent=1 // pred_region
      _
    $region25: #{tpu_custom_call.1} parent=1 // pred_fallthru
      _
    // Predicated region
    $region26: #{tpu_custom_call.1} parent=1 // pred_check
      _
    $region27: #{tpu_custom_call.1} parent=1 // pred_check_branch
      %28 = sbr.rel (0) target = $region29
    $region28: #{tpu_custom_call.1} parent=1 // pred_region
      _
    $region29: #{tpu_custom_call.1} parent=1 // pred_fallthru
      _
    // Predicated region
    $region30: #{tpu_custom_call.1} parent=1 // pred_check
      _
    $region31: #{tpu_custom_call.1} parent=1 // pred_check_branch
      %30 = sbr.rel (0) target = $region33
    $region32: #{tpu_custom_call.1} parent=1 // pred_region
      _
    $region33: #{tpu_custom_call.1} parent=1 // pred_fallthru
      _
    // Predicated region
    $region34: #{tpu_custom_call.1} parent=1 // pred_check
      _
    $region35: #{tpu_custom_call.1} parent=1 // pred_check_branch
      %32 = sbr.rel (0) target = $region37
    $region36: #{tpu_custom_call.1} parent=1 // pred_region
      _
    $region37: #{tpu_custom_call.1} parent=1 // pred_fallthru
      _
    %v34 = vld [vmem:[%s0] sm:$0xff]
    %v35 = vld [vmem:[%s0 + $0x8] sm:$0xff]
    %v36 = vld [vmem:[%s0 + $0x10] sm:$0xff]
    %v37 = vld [vmem:[%s0 + $0x18] sm:$0xff]
    %v38 = vld [vmem:[%s0 + $0x20] sm:$0xff]
    %v39 = vld [vmem:[%s0 + $0x28] sm:$0xff]
    %v40 = vld [vmem:[%s0 + $0x30] sm:$0xff]
    %v41 = vpack.c.bf16 %v34, %v34
    %v42 = vpack.c.bf16 %v35, %v35
    %v43 = vpack.c.bf16 %v36, %v36
    %v44 = vpack.c.bf16 %v37, %v37
    %v45 = vpack.c.bf16 %v38, %v38
    %v46 = vpack.c.bf16 %v39, %v39
    %v47 = vpack.c.bf16 %v40, %v40
    %v48 = vld [vmem:[%s1] sm:$0xff]
    %v49 = vld [vmem:[%s1 + $0x8] sm:$0xff]
    %v50 = vld [vmem:[%s1 + $0x10] sm:$0xff]
    %v51 = vld [vmem:[%s1 + $0x18] sm:$0xff]
    %v52 = vld [vmem:[%s1 + $0x20] sm:$0xff]
    %v53 = vld [vmem:[%s1 + $0x28] sm:$0xff]
    %v54 = vld [vmem:[%s1 + $0x30] sm:$0xff]
    %v55 = vld [vmem:[%s1 + $0x38] sm:$0xff]
    %v56 = vld [vmem:[%s1 + $0x40] sm:$0xff]
    %v57 = vld [vmem:[%s1 + $0x48] sm:$0xff]
    %v58 = vld [vmem:[%s1 + $0x50] sm:$0xff]
    %v59 = vld [vmem:[%s1 + $0x58] sm:$0xff]
    %v60 = vld [vmem:[%s1 + $0x60] sm:$0xff]
    %v61 = vld [vmem:[%s1 + $0x68] sm:$0xff]
    %v62 = vld [vmem:[%s1 + $0x70] sm:$0xff]
    %v63 = vld [vmem:[%s1 + $0x78] sm:$0xff]
    %v64 = vld [vmem:[%s1 + $0x80] sm:$0xff]
    %v65 = vld [vmem:[%s1 + $0x88] sm:$0xff]
    %v66 = vld [vmem:[%s1 + $0x90] sm:$0xff]
    %v67 = vld [vmem:[%s1 + $0x98] sm:$0xff]
    %v68 = vld [vmem:[%s1 + $0xa0] sm:$0xff]
    %v69 = vld [vmem:[%s1 + $0xa8] sm:$0xff]
    %v70 = vld [vmem:[%s1 + $0xb0] sm:$0xff]
    %v71 = vld [vmem:[%s1 + $0xb8] sm:$0xff]
    %v72 = vld [vmem:[%s1 + $0xc0] sm:$0xff]
    %v73 = vld [vmem:[%s1 + $0xc8] sm:$0xff]
    %v74 = vld [vmem:[%s1 + $0xd0] sm:$0xff]
    %v75 = vld [vmem:[%s1 + $0xd8] sm:$0xff]
    %v76 = vld [vmem:[%s1 + $0xe0] sm:$0xff]
    %v77 = vld [vmem:[%s1 + $0xe8] sm:$0xff]
    %v78 = vld [vmem:[%s1 + $0xf0] sm:$0xff]
    %v79 = vld [vmem:[%s1 + $0xf8] sm:$0xff]
    %v80 = vld [vmem:[%s1 + $0x100] sm:$0xff]
    %v81 = vld [vmem:[%s1 + $0x108] sm:$0xff]
    %v82 = vld [vmem:[%s1 + $0x110] sm:$0xff]
    %v83 = vld [vmem:[%s1 + $0x118] sm:$0xff]
    %v84 = vld [vmem:[%s1 + $0x120] sm:$0xff]
    %v85 = vld [vmem:[%s1 + $0x128] sm:$0xff]
    %v86 = vld [vmem:[%s1 + $0x130] sm:$0xff]
    %v87 = vld [vmem:[%s1 + $0x138] sm:$0xff]
    %v88 = vld [vmem:[%s1 + $0x140] sm:$0xff]
    %v89 = vld [vmem:[%s1 + $0x148] sm:$0xff]
    %v90 = vld [vmem:[%s1 + $0x150] sm:$0xff]
    %v91 = vld [vmem:[%s1 + $0x158] sm:$0xff]
    %v92 = vld [vmem:[%s1 + $0x160] sm:$0xff]
    %v93 = vld [vmem:[%s1 + $0x168] sm:$0xff]
    %v94 = vld [vmem:[%s1 + $0x170] sm:$0xff]
    %v95 = vld [vmem:[%s1 + $0x178] sm:$0xff]
    %v96 = vld [vmem:[%s1 + $0x180] sm:$0xff]
    %v97 = vld [vmem:[%s1 + $0x188] sm:$0xff]
    %v98 = vld [vmem:[%s1 + $0x190] sm:$0xff]
    %v99 = vld [vmem:[%s1 + $0x198] sm:$0xff]
    %v100 = vld [vmem:[%s1 + $0x1a0] sm:$0xff]
    %v101 = vld [vmem:[%s1 + $0x1a8] sm:$0xff]
    %v102 = vld [vmem:[%s1 + $0x1b0] sm:$0xff]
    %v103 = vld [vmem:[%s1 + $0x1b8] sm:$0xff]
    %v104 = vld [vmem:[%s1 + $0x1c0] sm:$0xff]
    %v105 = vld [vmem:[%s1 + $0x1c8] sm:$0xff]
    %v106 = vld [vmem:[%s1 + $0x1d0] sm:$0xff]
    %v107 = vld [vmem:[%s1 + $0x1d8] sm:$0xff]
    %v108 = vld [vmem:[%s1 + $0x1e0] sm:$0xff]
    %v109 = vld [vmem:[%s1 + $0x1e8] sm:$0xff]
    %v110 = vld [vmem:[%s1 + $0x1f0] sm:$0xff]
    %v111 = vld [vmem:[%s1 + $0x1f8] sm:$0xff]
    %v112 = vld [vmem:[%s1 + $0x200] sm:$0xff]
    %v113 = vld [vmem:[%s1 + $0x208] sm:$0xff]
    %v114 = vld [vmem:[%s1 + $0x210] sm:$0xff]
    %v115 = vld [vmem:[%s1 + $0x218] sm:$0xff]
    %v116 = vld [vmem:[%s1 + $0x220] sm:$0xff]
    %v117 = vld [vmem:[%s1 + $0x228] sm:$0xff]
    %v118 = vld [vmem:[%s1 + $0x230] sm:$0xff]
    %v119 = vld [vmem:[%s1 + $0x238] sm:$0xff]
    %v120 = vld [vmem:[%s1 + $0x240] sm:$0xff]
    %v121 = vld [vmem:[%s1 + $0x248] sm:$0xff]
    %v122 = vld [vmem:[%s1 + $0x250] sm:$0xff]
    %v123 = vld [vmem:[%s1 + $0x258] sm:$0xff]
    %v124 = vld [vmem:[%s1 + $0x260] sm:$0xff]
    %v125 = vld [vmem:[%s1 + $0x268] sm:$0xff]
    %v126 = vld [vmem:[%s1 + $0x270] sm:$0xff]
    %v127 = vld [vmem:[%s1 + $0x278] sm:$0xff]
    %v128 = vld [vmem:[%s1 + $0x280] sm:$0xff]
    %v129 = vld [vmem:[%s1 + $0x288] sm:$0xff]
    %v130 = vld [vmem:[%s1 + $0x290] sm:$0xff]
    %v131 = vld [vmem:[%s1 + $0x298] sm:$0xff]
    %v132 = vld [vmem:[%s1 + $0x2a0] sm:$0xff]
    %v133 = vld [vmem:[%s1 + $0x2a8] sm:$0xff]
    %v134 = vld [vmem:[%s1 + $0x2b0] sm:$0xff]
    %v135 = vld [vmem:[%s1 + $0x2b8] sm:$0xff]
    %v136 = vld [vmem:[%s1 + $0x2c0] sm:$0xff]
    %v137 = vld [vmem:[%s1 + $0x2c8] sm:$0xff]
    %v138 = vld [vmem:[%s1 + $0x2d0] sm:$0xff]
    %v139 = vld [vmem:[%s1 + $0x2d8] sm:$0xff]
    %v140 = vld [vmem:[%s1 + $0x2e0] sm:$0xff]
    %v141 = vld [vmem:[%s1 + $0x2e8] sm:$0xff]
    %v142 = vld [vmem:[%s1 + $0x2f0] sm:$0xff]
    %v143 = vld [vmem:[%s1 + $0x2f8] sm:$0xff]
    %v144 = vld [vmem:[%s1 + $0x300] sm:$0xff]
    %v145 = vld [vmem:[%s1 + $0x308] sm:$0xff]
    %v146 = vld [vmem:[%s2] sm:$0x3]
    %v148 = vlaneseq
    %v149 = vshrl.u32 %v148, 7
    %v150 = vsub.s32 0, %v149
    %v151 = vrot.slane %v146, %v150
    %v152 = vlaneseq
    %v153 = vshrl.u32 %v152, 7
    %v154 = vsub.s32 1, %v153
    %v155 = vrot.slane %v146, %v154
    %v256 = vunpack.c.l.b16 %v48
    %v257 = vunpack.c.h.b16 %v48
    %v258 = vunpack.c.l.b16 %v49
    %v259 = vunpack.c.h.b16 %v49
    %v260 = vunpack.c.l.b16 %v50
    %v261 = vunpack.c.h.b16 %v50
    %v262 = vunpack.c.l.b16 %v51
    %v263 = vunpack.c.h.b16 %v51
    %v264 = vunpack.c.l.b16 %v52
    %v265 = vunpack.c.h.b16 %v52
    %v266 = vunpack.c.l.b16 %v53
    %v267 = vunpack.c.h.b16 %v53
    %v268 = vunpack.c.l.b16 %v54
    %v269 = vunpack.c.h.b16 %v54
    %v270 = vunpack.c.l.b16 %v55
    %v271 = vunpack.c.h.b16 %v55
    %v272 = vunpack.c.l.b16 %v56
    %v273 = vunpack.c.h.b16 %v56
    %v274 = vunpack.c.l.b16 %v57
    %v275 = vunpack.c.h.b16 %v57
    %v276 = vunpack.c.l.b16 %v58
    %v277 = vunpack.c.h.b16 %v58
    %v278 = vunpack.c.l.b16 %v59
    %v279 = vunpack.c.h.b16 %v59
    %v280 = vunpack.c.l.b16 %v60
    %v281 = vunpack.c.h.b16 %v60
    %v282 = vunpack.c.l.b16 %v61
    %v283 = vunpack.c.h.b16 %v61
    %v284 = vunpack.c.l.b16 %v62
    %v285 = vunpack.c.h.b16 %v62
    %v286 = vunpack.c.l.b16 %v63
    %v287 = vunpack.c.h.b16 %v63
    %v288 = vunpack.c.l.b16 %v64
    %v289 = vunpack.c.h.b16 %v64
    %v290 = vunpack.c.l.b16 %v65
    %v291 = vunpack.c.h.b16 %v65
    %v292 = vunpack.c.l.b16 %v66
    %v293 = vunpack.c.h.b16 %v66
    %v294 = vunpack.c.l.b16 %v67
    %v295 = vunpack.c.h.b16 %v67
    %v296 = vunpack.c.l.b16 %v68
    %v297 = vunpack.c.h.b16 %v68
    %v298 = vunpack.c.l.b16 %v69
    %v299 = vunpack.c.h.b16 %v69
    %v300 = vunpack.c.l.b16 %v70
    %v301 = vunpack.c.h.b16 %v70
    %v302 = vunpack.c.l.b16 %v71
    %v303 = vunpack.c.h.b16 %v71
    %v304 = vunpack.c.l.b16 %v72
    %v305 = vunpack.c.h.b16 %v72
    %v306 = vunpack.c.l.b16 %v73
    %v307 = vunpack.c.h.b16 %v73
    %v308 = vunpack.c.l.b16 %v74
    %v309 = vunpack.c.h.b16 %v74
    %v310 = vunpack.c.l.b16 %v75
    %v311 = vunpack.c.h.b16 %v75
    %v312 = vunpack.c.l.b16 %v76
    %v313 = vunpack.c.h.b16 %v76
    %v314 = vunpack.c.l.b16 %v77
    %v315 = vunpack.c.h.b16 %v77
    %v316 = vunpack.c.l.b16 %v78
    %v317 = vunpack.c.h.b16 %v78
    %v318 = vunpack.c.l.b16 %v79
    %v319 = vunpack.c.h.b16 %v79
    %v320 = vunpack.c.l.b16 %v80
    %v321 = vunpack.c.h.b16 %v80
    %v322 = vunpack.c.l.b16 %v81
    %v323 = vunpack.c.h.b16 %v81
    %v324 = vunpack.c.l.b16 %v82
    %v325 = vunpack.c.h.b16 %v82
    %v326 = vunpack.c.l.b16 %v83
    %v327 = vunpack.c.h.b16 %v83
    %v328 = vunpack.c.l.b16 %v84
    %v329 = vunpack.c.h.b16 %v84
    %v330 = vunpack.c.l.b16 %v85
    %v331 = vunpack.c.h.b16 %v85
    %v332 = vunpack.c.l.b16 %v86
    %v333 = vunpack.c.h.b16 %v86
    %v334 = vunpack.c.l.b16 %v87
    %v335 = vunpack.c.h.b16 %v87
    %v336 = vunpack.c.l.b16 %v88
    %v337 = vunpack.c.h.b16 %v88
    %v338 = vunpack.c.l.b16 %v89
    %v339 = vunpack.c.h.b16 %v89
    %v340 = vunpack.c.l.b16 %v90
    %v341 = vunpack.c.h.b16 %v90
    %v342 = vunpack.c.l.b16 %v91
    %v343 = vunpack.c.h.b16 %v91
    %v344 = vunpack.c.l.b16 %v92
    %v345 = vunpack.c.h.b16 %v92
    %v346 = vunpack.c.l.b16 %v93
    %v347 = vunpack.c.h.b16 %v93
    %v348 = vunpack.c.l.b16 %v94
    %v349 = vunpack.c.h.b16 %v94
    %v350 = vunpack.c.l.b16 %v95
    %v351 = vunpack.c.h.b16 %v95
    %v352 = vunpack.c.l.b16 %v96
    %v353 = vunpack.c.h.b16 %v96
    %v354 = vunpack.c.l.b16 %v97
    %v355 = vunpack.c.h.b16 %v97
    %v356 = vunpack.c.l.b16 %v98
    %v357 = vunpack.c.h.b16 %v98
    %v358 = vunpack.c.l.b16 %v99
    %v359 = vunpack.c.h.b16 %v99
    %v360 = vunpack.c.l.b16 %v100
    %v361 = vunpack.c.h.b16 %v100
    %v362 = vunpack.c.l.b16 %v101
    %v363 = vunpack.c.h.b16 %v101
    %v364 = vunpack.c.l.b16 %v102
    %v365 = vunpack.c.h.b16 %v102
    %v366 = vunpack.c.l.b16 %v103
    %v367 = vunpack.c.h.b16 %v103
    %v368 = vunpack.c.l.b16 %v104
    %v369 = vunpack.c.h.b16 %v104
    %v370 = vunpack.c.l.b16 %v105
    %v371 = vunpack.c.h.b16 %v105
    %v372 = vunpack.c.l.b16 %v106
    %v373 = vunpack.c.h.b16 %v106
    %v374 = vunpack.c.l.b16 %v107
    %v375 = vunpack.c.h.b16 %v107
    %v376 = vunpack.c.l.b16 %v108
    %v377 = vunpack.c.h.b16 %v108
    %v378 = vunpack.c.l.b16 %v109
    %v379 = vunpack.c.h.b16 %v109
    %v380 = vunpack.c.l.b16 %v110
    %v381 = vunpack.c.h.b16 %v110
    %v382 = vunpack.c.l.b16 %v111
    %v383 = vunpack.c.h.b16 %v111
    %v384 = vunpack.c.l.b16 %v112
    %v385 = vunpack.c.h.b16 %v112
    %v386 = vunpack.c.l.b16 %v113
    %v387 = vunpack.c.h.b16 %v113
    %v388 = vunpack.c.l.b16 %v114
    %v389 = vunpack.c.h.b16 %v114
    %v390 = vunpack.c.l.b16 %v115
    %v391 = vunpack.c.h.b16 %v115
    %v392 = vunpack.c.l.b16 %v116
    %v393 = vunpack.c.h.b16 %v116
    %v394 = vunpack.c.l.b16 %v117
    %v395 = vunpack.c.h.b16 %v117
    %v396 = vunpack.c.l.b16 %v118
    %v397 = vunpack.c.h.b16 %v118
    %v398 = vunpack.c.l.b16 %v119
    %v399 = vunpack.c.h.b16 %v119
    %v400 = vunpack.c.l.b16 %v120
    %v401 = vunpack.c.h.b16 %v120
    %v402 = vunpack.c.l.b16 %v121
    %v403 = vunpack.c.h.b16 %v121
    %v404 = vunpack.c.l.b16 %v122
    %v405 = vunpack.c.h.b16 %v122
    %v406 = vunpack.c.l.b16 %v123
    %v407 = vunpack.c.h.b16 %v123
    %v408 = vunpack.c.l.b16 %v124
    %v409 = vunpack.c.h.b16 %v124
    %v410 = vunpack.c.l.b16 %v125
    %v411 = vunpack.c.h.b16 %v125
    %v412 = vunpack.c.l.b16 %v126
    %v413 = vunpack.c.h.b16 %v126
    %v414 = vunpack.c.l.b16 %v127
    %v415 = vunpack.c.h.b16 %v127
    %v416 = vunpack.c.l.b16 %v128
    %v417 = vunpack.c.h.b16 %v128
    %v418 = vunpack.c.l.b16 %v129
    %v419 = vunpack.c.h.b16 %v129
    %v420 = vunpack.c.l.b16 %v130
    %v421 = vunpack.c.h.b16 %v130
    %v422 = vunpack.c.l.b16 %v131
    %v423 = vunpack.c.h.b16 %v131
    %v424 = vunpack.c.l.b16 %v132
    %v425 = vunpack.c.h.b16 %v132
    %v426 = vunpack.c.l.b16 %v133
    %v427 = vunpack.c.h.b16 %v133
    %v428 = vunpack.c.l.b16 %v134
    %v429 = vunpack.c.h.b16 %v134
    %v430 = vunpack.c.l.b16 %v135
    %v431 = vunpack.c.h.b16 %v135
    %v432 = vunpack.c.l.b16 %v136
    %v433 = vunpack.c.h.b16 %v136
    %v434 = vunpack.c.l.b16 %v137
    %v435 = vunpack.c.h.b16 %v137
    %v436 = vunpack.c.l.b16 %v138
    %v437 = vunpack.c.h.b16 %v138
    %v438 = vunpack.c.l.b16 %v139
    %v439 = vunpack.c.h.b16 %v139
    %v440 = vunpack.c.l.b16 %v140
    %v441 = vunpack.c.h.b16 %v140
    %v442 = vunpack.c.l.b16 %v141
    %v443 = vunpack.c.h.b16 %v141
    %v444 = vunpack.c.l.b16 %v142
    %v445 = vunpack.c.h.b16 %v142
    %v446 = vunpack.c.l.b16 %v143
    %v447 = vunpack.c.h.b16 %v143
    %v448 = vunpack.c.l.b16 %v144
    %v449 = vunpack.c.h.b16 %v144
    %v450 = vunpack.c.l.b16 %v145
    %v451 = vunpack.c.h.b16 %v145
    %v452 = vpack.c.b16 %v258, %v256
    %v453 = vpack.c.b16 %v259, %v257
    %v454 = vpack.c.b16 %v262, %v260
    %v455 = vpack.c.b16 %v263, %v261
    %v456 = vpack.c.b16 %v266, %v264
    %v457 = vpack.c.b16 %v267, %v265
    %v458 = vpack.c.b16 %v270, %v268
    %v459 = vpack.c.b16 %v271, %v269
    %v460 = vpack.c.b16 %v274, %v272
    %v461 = vpack.c.b16 %v275, %v273
    %v462 = vpack.c.b16 %v278, %v276
    %v463 = vpack.c.b16 %v279, %v277
    %v464 = vpack.c.b16 %v282, %v280
    %v465 = vpack.c.b16 %v283, %v281
    %v466 = vpack.c.b16 %v286, %v284
    %v467 = vpack.c.b16 %v287, %v285
    %v468 = vpack.c.b16 %v290, %v288
    %v469 = vpack.c.b16 %v291, %v289
    %v470 = vpack.c.b16 %v294, %v292
    %v471 = vpack.c.b16 %v295, %v293
    %v472 = vpack.c.b16 %v298, %v296
    %v473 = vpack.c.b16 %v299, %v297
    %v474 = vpack.c.b16 %v302, %v300
    %v475 = vpack.c.b16 %v303, %v301
    %v476 = vpack.c.b16 %v306, %v304
    %v477 = vpack.c.b16 %v307, %v305
    %v478 = vpack.c.b16 %v310, %v308
    %v479 = vpack.c.b16 %v311, %v309
    %v480 = vpack.c.b16 %v314, %v312
    %v481 = vpack.c.b16 %v315, %v313
    %v482 = vpack.c.b16 %v318, %v316
    %v483 = vpack.c.b16 %v319, %v317
    %v484 = vpack.c.b16 %v322, %v320
    %v485 = vpack.c.b16 %v323, %v321
    %v486 = vpack.c.b16 %v326, %v324
    %v487 = vpack.c.b16 %v327, %v325
    %v488 = vpack.c.b16 %v330, %v328
    %v489 = vpack.c.b16 %v331, %v329
    %v490 = vpack.c.b16 %v334, %v332
    %v491 = vpack.c.b16 %v335, %v333
    %v492 = vpack.c.b16 %v338, %v336
    %v493 = vpack.c.b16 %v339, %v337
    %v494 = vpack.c.b16 %v342, %v340
    %v495 = vpack.c.b16 %v343, %v341
    %v496 = vpack.c.b16 %v346, %v344
    %v497 = vpack.c.b16 %v347, %v345
    %v498 = vpack.c.b16 %v350, %v348
    %v499 = vpack.c.b16 %v351, %v349
    %v500 = vpack.c.b16 %v354, %v352
    %v501 = vpack.c.b16 %v355, %v353
    %v502 = vpack.c.b16 %v358, %v356
    %v503 = vpack.c.b16 %v359, %v357
    %v504 = vpack.c.b16 %v362, %v360
    %v505 = vpack.c.b16 %v363, %v361
    %v506 = vpack.c.b16 %v366, %v364
    %v507 = vpack.c.b16 %v367, %v365
    %v508 = vpack.c.b16 %v370, %v368
    %v509 = vpack.c.b16 %v371, %v369
    %v510 = vpack.c.b16 %v374, %v372
    %v511 = vpack.c.b16 %v375, %v373
    %v512 = vpack.c.b16 %v378, %v376
    %v513 = vpack.c.b16 %v379, %v377
    %v514 = vpack.c.b16 %v382, %v380
    %v515 = vpack.c.b16 %v383, %v381
    %v516 = vpack.c.b16 %v386, %v384
    %v517 = vpack.c.b16 %v387, %v385
    %v518 = vpack.c.b16 %v390, %v388
    %v519 = vpack.c.b16 %v391, %v389
    %v520 = vpack.c.b16 %v394, %v392
    %v521 = vpack.c.b16 %v395, %v393
    %v522 = vpack.c.b16 %v398, %v396
    %v523 = vpack.c.b16 %v399, %v397
    %v524 = vpack.c.b16 %v402, %v400
    %v525 = vpack.c.b16 %v403, %v401
    %v526 = vpack.c.b16 %v406, %v404
    %v527 = vpack.c.b16 %v407, %v405
    %v528 = vpack.c.b16 %v410, %v408
    %v529 = vpack.c.b16 %v411, %v409
    %v530 = vpack.c.b16 %v414, %v412
    %v531 = vpack.c.b16 %v415, %v413
    %v532 = vpack.c.b16 %v418, %v416
    %v533 = vpack.c.b16 %v419, %v417
    %v534 = vpack.c.b16 %v422, %v420
    %v535 = vpack.c.b16 %v423, %v421
    %v536 = vpack.c.b16 %v426, %v424
    %v537 = vpack.c.b16 %v427, %v425
    %v538 = vpack.c.b16 %v430, %v428
    %v539 = vpack.c.b16 %v431, %v429
    %v540 = vpack.c.b16 %v434, %v432
    %v541 = vpack.c.b16 %v435, %v433
    %v542 = vpack.c.b16 %v438, %v436
    %v543 = vpack.c.b16 %v439, %v437
    %v544 = vpack.c.b16 %v442, %v440
    %v545 = vpack.c.b16 %v443, %v441
    %v546 = vpack.c.b16 %v446, %v444
    %v547 = vpack.c.b16 %v447, %v445
    %v548 = vpack.c.b16 %v450, %v448
    %v549 = vpack.c.b16 %v451, %v449
    %vm648 = vcmask 130048
    %v650 = vsel %vm648, %v47, 0
    %652 = vmatprep.subr.bf16.mxu0 %v453
    %653 = vmatpush1.bf16.msra.mxu0 %v452
    %654 = vmatprep.subr.bf16.mxu0 %v455
    %655 = vmatpush1.bf16.msra.mxu0 %v454
    %656 = vmatprep.subr.bf16.mxu0 %v457
    %657 = vmatpush1.bf16.msra.mxu0 %v456
    %658 = vmatprep.subr.bf16.mxu0 %v459
    %659 = vmatpush1.bf16.msra.mxu0 %v458
    %660 = vmatprep.subr.bf16.mxu0 %v461
    %661 = vmatpush1.bf16.msra.mxu0 %v460
    %662 = vmatprep.subr.bf16.mxu0 %v463
    %663 = vmatpush1.bf16.msra.mxu0 %v462
    %664 = vmatprep.subr.bf16.mxu0 %v465
    %665 = vmatpush1.bf16.msra.mxu0 %v464
    %666 = vmatprep.subr.bf16.mxu0 %v467
    %667 = vmatpush1.bf16.msra.mxu0 %v466
    %668 = vmatprep.subr.bf16.mxu0 %v469
    %669 = vmatpush1.bf16.msra.mxu0 %v468
    %670 = vmatprep.subr.bf16.mxu0 %v471
    %671 = vmatpush1.bf16.msra.mxu0 %v470
    %672 = vmatprep.subr.bf16.mxu0 %v473
    %673 = vmatpush1.bf16.msra.mxu0 %v472
    %674 = vmatprep.subr.bf16.mxu0 %v475
    %675 = vmatpush1.bf16.msra.mxu0 %v474
    %676 = vmatprep.subr.bf16.mxu0 %v477
    %677 = vmatpush1.bf16.msra.mxu0 %v476
    %678 = vmatprep.subr.bf16.mxu0 %v479
    %679 = vmatpush1.bf16.msra.mxu0 %v478
    %680 = vmatprep.subr.bf16.mxu0 %v481
    %681 = vmatpush1.bf16.msra.mxu0 %v480
    %682 = vmatprep.subr.bf16.mxu0 %v483
    %683 = vmatpush1.bf16.msra.mxu0 %v482
    %684 = vmatprep.mubr.bf16.mxu0 %v42
    %685 = vmatmul.mubr.bf16.gmra.mrb[0].mxu0 %v41
    %v686 = vpop.f32.mrb[0].mxu0
    %v687 = vadd.f32 %v151, %v686
    %v688 = vpop.f32.mrb[0].mxu0
    %v689 = vadd.f32 %v155, %v688
    %v690 = vpop.f32.mrb[0].mxu0
    %v691 = vpop.f32.mrb[0].mxu0
    %692 = vdwg.mxu0
    %693 = vmatprep.subr.bf16.mxu0 %v485
    %694 = vmatpush1.bf16.msra.mxu0 %v484
    %695 = vmatprep.subr.bf16.mxu0 %v487
    %696 = vmatpush1.bf16.msra.mxu0 %v486
    %697 = vmatprep.subr.bf16.mxu0 %v489
    %698 = vmatpush1.bf16.msra.mxu0 %v488
    %699 = vmatprep.subr.bf16.mxu0 %v491
    %700 = vmatpush1.bf16.msra.mxu0 %v490
    %701 = vmatprep.subr.bf16.mxu0 %v493
    %702 = vmatpush1.bf16.msra.mxu0 %v492
    %703 = vmatprep.subr.bf16.mxu0 %v495
    %704 = vmatpush1.bf16.msra.mxu0 %v494
    %705 = vmatprep.subr.bf16.mxu0 %v497
    %706 = vmatpush1.bf16.msra.mxu0 %v496
    %707 = vmatprep.subr.bf16.mxu0 %v499
    %708 = vmatpush1.bf16.msra.mxu0 %v498
    %709 = vmatprep.subr.bf16.mxu0 %v501
    %710 = vmatpush1.bf16.msra.mxu0 %v500
    %711 = vmatprep.subr.bf16.mxu0 %v503
    %712 = vmatpush1.bf16.msra.mxu0 %v502
    %713 = vmatprep.subr.bf16.mxu0 %v505
    %714 = vmatpush1.bf16.msra.mxu0 %v504
    %715 = vmatprep.subr.bf16.mxu0 %v507
    %716 = vmatpush1.bf16.msra.mxu0 %v506
    %717 = vmatprep.subr.bf16.mxu0 %v509
    %718 = vmatpush1.bf16.msra.mxu0 %v508
    %719 = vmatprep.subr.bf16.mxu0 %v511
    %720 = vmatpush1.bf16.msra.mxu0 %v510
    %721 = vmatprep.subr.bf16.mxu0 %v513
    %722 = vmatpush1.bf16.msra.mxu0 %v512
    %723 = vmatprep.subr.bf16.mxu0 %v515
    %724 = vmatpush1.bf16.msra.mxu0 %v514
    %725 = vmatprep.mubr.bf16.mxu0 %v44
    %726 = vmatmul.mubr.bf16.gmra.mrb[0].mxu0 %v43
    %v727 = vpop.f32.mrb[0].mxu0
    %v728 = vadd.f32 %v687, %v727
    %v729 = vpop.f32.mrb[0].mxu0
    %v730 = vadd.f32 %v689, %v729
    %v731 = vpop.f32.mrb[0].mxu0
    %v732 = vpop.f32.mrb[0].mxu0
    %733 = vdwg.mxu0
    %734 = vmatprep.subr.bf16.mxu0 %v517
    %735 = vmatpush1.bf16.msra.mxu0 %v516
    %736 = vmatprep.subr.bf16.mxu0 %v519
    %737 = vmatpush1.bf16.msra.mxu0 %v518
    %738 = vmatprep.subr.bf16.mxu0 %v521
    %739 = vmatpush1.bf16.msra.mxu0 %v520
    %740 = vmatprep.subr.bf16.mxu0 %v523
    %741 = vmatpush1.bf16.msra.mxu0 %v522
    %742 = vmatprep.subr.bf16.mxu0 %v525
    %743 = vmatpush1.bf16.msra.mxu0 %v524
    %744 = vmatprep.subr.bf16.mxu0 %v527
    %745 = vmatpush1.bf16.msra.mxu0 %v526
    %746 = vmatprep.subr.bf16.mxu0 %v529
    %747 = vmatpush1.bf16.msra.mxu0 %v528
    %748 = vmatprep.subr.bf16.mxu0 %v531
    %749 = vmatpush1.bf16.msra.mxu0 %v530
    %750 = vmatprep.subr.bf16.mxu0 %v533
    %751 = vmatpush1.bf16.msra.mxu0 %v532
    %752 = vmatprep.subr.bf16.mxu0 %v535
    %753 = vmatpush1.bf16.msra.mxu0 %v534
    %754 = vmatprep.subr.bf16.mxu0 %v537
    %755 = vmatpush1.bf16.msra.mxu0 %v536
    %756 = vmatprep.subr.bf16.mxu0 %v539
    %757 = vmatpush1.bf16.msra.mxu0 %v538
    %758 = vmatprep.subr.bf16.mxu0 %v541
    %759 = vmatpush1.bf16.msra.mxu0 %v540
    %760 = vmatprep.subr.bf16.mxu0 %v543
    %761 = vmatpush1.bf16.msra.mxu0 %v542
    %762 = vmatprep.subr.bf16.mxu0 %v545
    %763 = vmatpush1.bf16.msra.mxu0 %v544
    %764 = vmatprep.subr.bf16.mxu0 %v547
    %765 = vmatpush1.bf16.msra.mxu0 %v546
    %766 = vmatprep.mubr.bf16.mxu0 %v46
    %767 = vmatmul.mubr.bf16.gmra.mrb[0].mxu0 %v45
    %v768 = vpop.f32.mrb[0].mxu0
    %v769 = vadd.f32 %v728, %v768
    %v770 = vpop.f32.mrb[0].mxu0
    %v771 = vadd.f32 %v730, %v770
    %v772 = vpop.f32.mrb[0].mxu0
    %v773 = vpop.f32.mrb[0].mxu0
    %774 = vdwg.mxu0
    %775 = vmatprep.subr.bf16.mxu0 %v549
    %776 = vmatpush1.bf16.msra.mxu0 %v548
    %777 = vmatprep.subr.bf16.mxu0 0
    %778 = vmatpush1.bf16.msra.mxu0 0
    %779 = vmatprep.subr.bf16.mxu0 0
    %780 = vmatpush1.bf16.msra.mxu0 0
    %781 = vmatprep.subr.bf16.mxu0 0
    %782 = vmatpush1.bf16.msra.mxu0 0
    %783 = vmatprep.subr.bf16.mxu0 0
    %784 = vmatpush1.bf16.msra.mxu0 0
    %785 = vmatprep.subr.bf16.mxu0 0
    %786 = vmatpush1.bf16.msra.mxu0 0
    %787 = vmatprep.subr.bf16.mxu0 0
    %788 = vmatpush1.bf16.msra.mxu0 0
    %789 = vmatprep.subr.bf16.mxu0 0
    %790 = vmatpush1.bf16.msra.mxu0 0
    %791 = vmatprep.subr.bf16.mxu0 0
    %792 = vmatpush1.bf16.msra.mxu0 0
    %793 = vmatprep.subr.bf16.mxu0 0
    %794 = vmatpush1.bf16.msra.mxu0 0
    %795 = vmatprep.subr.bf16.mxu0 0
    %796 = vmatpush1.bf16.msra.mxu0 0
    %797 = vmatprep.subr.bf16.mxu0 0
    %798 = vmatpush1.bf16.msra.mxu0 0
    %799 = vmatprep.subr.bf16.mxu0 0
    %800 = vmatpush1.bf16.msra.mxu0 0
    %801 = vmatprep.subr.bf16.mxu0 0
    %802 = vmatpush1.bf16.msra.mxu0 0
    %803 = vmatprep.subr.bf16.mxu0 0
    %804 = vmatpush1.bf16.msra.mxu0 0
    %805 = vmatprep.subr.bf16.mxu0 0
    %806 = vmatpush1.bf16.msra.mxu0 0
    %807 = vmatprep.mubr.bf16.mxu0 0
    %808 = vmatmul.mubr.bf16.gmra.mrb[0].mxu0 %v650
    %v809 = vpop.f32.mrb[0].mxu0
    %v810 = vadd.f32 %v769, %v809
    %v811 = vpop.f32.mrb[0].mxu0
    %v812 = vadd.f32 %v771, %v811
    %v813 = vpop.f32.mrb[0].mxu0
    %v814 = vpop.f32.mrb[0].mxu0
    %815 = vdwg.mxu0
    %v816 = vmax.f32 %v810, 0.0
    %v817 = vmax.f32 %v812, 0.0
    %v818 = vpack.c.bf16 %v816, %v816
    %v819 = vpack.c.bf16 %v817, %v817
    %v820 = vld [vmem:[%s3] sm:$0xf]
    %v821 = vld [vmem:[%s3 + $0x4] sm:$0xf]
    %v822 = vld [vmem:[%s3 + $0x8] sm:$0xf]
    %v823 = vld [vmem:[%s3 + $0xc] sm:$0xf]
    %v824 = vld [vmem:[%s3 + $0x10] sm:$0xf]
    %v825 = vld [vmem:[%s3 + $0x14] sm:$0xf]
    %v826 = vld [vmem:[%s3 + $0x18] sm:$0xf]
    %v827 = vld [vmem:[%s3 + $0x1c] sm:$0xf]
    %v828 = vld [vmem:[%s3 + $0x20] sm:$0xf]
    %v829 = vld [vmem:[%s3 + $0x24] sm:$0xf]
    %v830 = vld [vmem:[%s3 + $0x28] sm:$0xf]
    %v831 = vld [vmem:[%s3 + $0x2c] sm:$0xf]
    %v832 = vld [vmem:[%s3 + $0x30] sm:$0xf]
    %v833 = vld [vmem:[%s3 + $0x34] sm:$0xf]
    %v834 = vld [vmem:[%s3 + $0x38] sm:$0xf]
    %v835 = vld [vmem:[%s3 + $0x3c] sm:$0xf]
    %v836 = vld [vmem:[%s3 + $0x40] sm:$0xf]
    %v837 = vld [vmem:[%s3 + $0x44] sm:$0xf]
    %v838 = vld [vmem:[%s3 + $0x48] sm:$0xf]
    %v839 = vld [vmem:[%s3 + $0x4c] sm:$0xf]
    %v840 = vld [vmem:[%s3 + $0x50] sm:$0xf]
    %v841 = vld [vmem:[%s3 + $0x54] sm:$0xf]
    %v842 = vld [vmem:[%s3 + $0x58] sm:$0xf]
    %v843 = vld [vmem:[%s3 + $0x5c] sm:$0xf]
    %v844 = vld [vmem:[%s3 + $0x60] sm:$0xf]
    %v845 = vld [vmem:[%s3 + $0x64] sm:$0xf]
    %v846 = vld [vmem:[%s3 + $0x68] sm:$0xf]
    %v847 = vld [vmem:[%s3 + $0x6c] sm:$0xf]
    %v848 = vld [vmem:[%s3 + $0x70] sm:$0xf]
    %v849 = vld [vmem:[%s3 + $0x74] sm:$0xf]
    %v850 = vld [vmem:[%s3 + $0x78] sm:$0xf]
    %v851 = vld [vmem:[%s3 + $0x7c] sm:$0xf]
    %v852 = vld [vmem:[%s4] sm:$0x1]
    %v854 = vlaneseq
    %v855 = vshrl.u32 %v854, 7
    %v856 = vsub.s32 0, %v855
    %v857 = vrot.slane %v852, %v856
    %v891 = vunpack.c.l.b16 %v820
    %v892 = vunpack.c.l.b16 %v821
    %v893 = vunpack.c.l.b16 %v822
    %v894 = vunpack.c.l.b16 %v823
    %v895 = vunpack.c.l.b16 %v824
    %v896 = vunpack.c.l.b16 %v825
    %v897 = vunpack.c.l.b16 %v826
    %v898 = vunpack.c.l.b16 %v827
    %v899 = vunpack.c.l.b16 %v828
    %v900 = vunpack.c.l.b16 %v829
    %v901 = vunpack.c.l.b16 %v830
    %v902 = vunpack.c.l.b16 %v831
    %v903 = vunpack.c.l.b16 %v832
    %v904 = vunpack.c.l.b16 %v833
    %v905 = vunpack.c.l.b16 %v834
    %v906 = vunpack.c.l.b16 %v835
    %v907 = vunpack.c.l.b16 %v836
    %v908 = vunpack.c.l.b16 %v837
    %v909 = vunpack.c.l.b16 %v838
    %v910 = vunpack.c.l.b16 %v839
    %v911 = vunpack.c.l.b16 %v840
    %v912 = vunpack.c.l.b16 %v841
    %v913 = vunpack.c.l.b16 %v842
    %v914 = vunpack.c.l.b16 %v843
    %v915 = vunpack.c.l.b16 %v844
    %v916 = vunpack.c.l.b16 %v845
    %v917 = vunpack.c.l.b16 %v846
    %v918 = vunpack.c.l.b16 %v847
    %v919 = vunpack.c.l.b16 %v848
    %v920 = vunpack.c.l.b16 %v849
    %v921 = vunpack.c.l.b16 %v850
    %v922 = vunpack.c.l.b16 %v851
    %v923 = vpack.c.b16 %v892, %v891
    %v924 = vpack.c.b16 %v894, %v893
    %v925 = vpack.c.b16 %v896, %v895
    %v926 = vpack.c.b16 %v898, %v897
    %v927 = vpack.c.b16 %v900, %v899
    %v928 = vpack.c.b16 %v902, %v901
    %v929 = vpack.c.b16 %v904, %v903
    %v930 = vpack.c.b16 %v906, %v905
    %v931 = vpack.c.b16 %v908, %v907
    %v932 = vpack.c.b16 %v910, %v909
    %v933 = vpack.c.b16 %v912, %v911
    %v934 = vpack.c.b16 %v914, %v913
    %v935 = vpack.c.b16 %v916, %v915
    %v936 = vpack.c.b16 %v918, %v917
    %v937 = vpack.c.b16 %v920, %v919
    %v938 = vpack.c.b16 %v922, %v921
    %955 = vmatprep.subr.bf16.mxu0 0
    %956 = vmatpush1.bf16.msra.mxu0 %v923
    %957 = vmatprep.subr.bf16.mxu0 0
    %958 = vmatpush1.bf16.msra.mxu0 %v924
    %959 = vmatprep.subr.bf16.mxu0 0
    %960 = vmatpush1.bf16.msra.mxu0 %v925
    %961 = vmatprep.subr.bf16.mxu0 0
    %962 = vmatpush1.bf16.msra.mxu0 %v926
    %963 = vmatprep.subr.bf16.mxu0 0
    %964 = vmatpush1.bf16.msra.mxu0 %v927
    %965 = vmatprep.subr.bf16.mxu0 0
    %966 = vmatpush1.bf16.msra.mxu0 %v928
    %967 = vmatprep.subr.bf16.mxu0 0
    %968 = vmatpush1.bf16.msra.mxu0 %v929
    %969 = vmatprep.subr.bf16.mxu0 0
    %970 = vmatpush1.bf16.msra.mxu0 %v930
    %971 = vmatprep.subr.bf16.mxu0 0
    %972 = vmatpush1.bf16.msra.mxu0 %v931
    %973 = vmatprep.subr.bf16.mxu0 0
    %974 = vmatpush1.bf16.msra.mxu0 %v932
    %975 = vmatprep.subr.bf16.mxu0 0
    %976 = vmatpush1.bf16.msra.mxu0 %v933
    %977 = vmatprep.subr.bf16.mxu0 0
    %978 = vmatpush1.bf16.msra.mxu0 %v934
    %979 = vmatprep.subr.bf16.mxu0 0
    %980 = vmatpush1.bf16.msra.mxu0 %v935
    %981 = vmatprep.subr.bf16.mxu0 0
    %982 = vmatpush1.bf16.msra.mxu0 %v936
    %983 = vmatprep.subr.bf16.mxu0 0
    %984 = vmatpush1.bf16.msra.mxu0 %v937
    %985 = vmatprep.subr.bf16.mxu0 0
    %986 = vmatpush1.bf16.msra.mxu0 %v938
    %987 = vmatprep.mubr.bf16.mxu0 %v819
    %988 = vmatmul.mubr.bf16.gmra.mrb[0].mxu0 %v818
    %v989 = vpop.f32.mrb[0].mxu0
    %v990 = vadd.f32 %v857, %v989
    %v991 = vpop.f32.mrb[0].mxu0
    %v992 = vpop.f32.mrb[0].mxu0
    %v993 = vpop.f32.mrb[0].mxu0
    %994 = vdwg.mxu0
    %v995 = vmax.f32 %v990, 0.0
    %v996 = vpack.c.bf16 %v995, %v995
    %v997 = vld [vmem:[%s5] sm:$0xff]
    %v998 = vld [vmem:[%s5 + $0x8] sm:$0xff]
    %v999 = vld [vmem:[%s5 + $0x10] sm:$0xff]
    %v1000 = vld [vmem:[%s5 + $0x18] sm:$0xff]
    %v1001 = vld [vmem:[%s5 + $0x20] sm:$0xff]
    %v1002 = vld [vmem:[%s5 + $0x28] sm:$0xff]
    %v1003 = vld [vmem:[%s5 + $0x30] sm:$0xff]
    %v1004 = vld [vmem:[%s5 + $0x38] sm:$0xff]
    %v1005 = vld [vmem:[%s5 + $0x40] sm:$0xff]
    %v1006 = vld [vmem:[%s5 + $0x48] sm:$0xff]
    %v1007 = vld [vmem:[%s5 + $0x50] sm:$0xff]
    %v1008 = vld [vmem:[%s5 + $0x58] sm:$0xff]
    %v1009 = vld [vmem:[%s5 + $0x60] sm:$0xff]
    %v1010 = vld [vmem:[%s5 + $0x68] sm:$0xff]
    %v1011 = vld [vmem:[%s5 + $0x70] sm:$0xff]
    %v1012 = vld [vmem:[%s5 + $0x78] sm:$0xff]
    %v1013 = vld [vmem:[%s6] sm:$0x3]
    %v1015 = vlaneseq
    %v1016 = vshrl.u32 %v1015, 7
    %v1017 = vsub.s32 0, %v1016
    %v1018 = vrot.slane %v1013, %v1017
    %v1019 = vlaneseq
    %v1020 = vshrl.u32 %v1019, 7
    %v1021 = vsub.s32 1, %v1020
    %v1022 = vrot.slane %v1013, %v1021
    %v1041 = vunpack.c.l.b16 %v997
    %v1042 = vunpack.c.h.b16 %v997
    %v1043 = vunpack.c.l.b16 %v998
    %v1044 = vunpack.c.h.b16 %v998
    %v1045 = vunpack.c.l.b16 %v999
    %v1046 = vunpack.c.h.b16 %v999
    %v1047 = vunpack.c.l.b16 %v1000
    %v1048 = vunpack.c.h.b16 %v1000
    %v1049 = vunpack.c.l.b16 %v1001
    %v1050 = vunpack.c.h.b16 %v1001
    %v1051 = vunpack.c.l.b16 %v1002
    %v1052 = vunpack.c.h.b16 %v1002
    %v1053 = vunpack.c.l.b16 %v1003
    %v1054 = vunpack.c.h.b16 %v1003
    %v1055 = vunpack.c.l.b16 %v1004
    %v1056 = vunpack.c.h.b16 %v1004
    %v1057 = vunpack.c.l.b16 %v1005
    %v1058 = vunpack.c.h.b16 %v1005
    %v1059 = vunpack.c.l.b16 %v1006
    %v1060 = vunpack.c.h.b16 %v1006
    %v1061 = vunpack.c.l.b16 %v1007
    %v1062 = vunpack.c.h.b16 %v1007
    %v1063 = vunpack.c.l.b16 %v1008
    %v1064 = vunpack.c.h.b16 %v1008
    %v1065 = vunpack.c.l.b16 %v1009
    %v1066 = vunpack.c.h.b16 %v1009
    %v1067 = vunpack.c.l.b16 %v1010
    %v1068 = vunpack.c.h.b16 %v1010
    %v1069 = vunpack.c.l.b16 %v1011
    %v1070 = vunpack.c.h.b16 %v1011
    %v1071 = vunpack.c.l.b16 %v1012
    %v1072 = vunpack.c.h.b16 %v1012
    %v1073 = vpack.c.b16 %v1043, %v1041
    %v1074 = vpack.c.b16 %v1044, %v1042
    %v1075 = vpack.c.b16 %v1047, %v1045
    %v1076 = vpack.c.b16 %v1048, %v1046
    %v1077 = vpack.c.b16 %v1051, %v1049
    %v1078 = vpack.c.b16 %v1052, %v1050
    %v1079 = vpack.c.b16 %v1055, %v1053
    %v1080 = vpack.c.b16 %v1056, %v1054
    %v1081 = vpack.c.b16 %v1059, %v1057
    %v1082 = vpack.c.b16 %v1060, %v1058
    %v1083 = vpack.c.b16 %v1063, %v1061
    %v1084 = vpack.c.b16 %v1064, %v1062
    %v1085 = vpack.c.b16 %v1067, %v1065
    %v1086 = vpack.c.b16 %v1068, %v1066
    %v1087 = vpack.c.b16 %v1071, %v1069
    %v1088 = vpack.c.b16 %v1072, %v1070
    %1105 = vmatprep.subr.bf16.mxu0 %v1074
    %1106 = vmatpush1.bf16.msra.mxu0 %v1073
    %1107 = vmatprep.subr.bf16.mxu0 %v1076
    %1108 = vmatpush1.bf16.msra.mxu0 %v1075
    %1109 = vmatprep.subr.bf16.mxu0 %v1078
    %1110 = vmatpush1.bf16.msra.mxu0 %v1077
    %1111 = vmatprep.subr.bf16.mxu0 %v1080
    %1112 = vmatpush1.bf16.msra.mxu0 %v1079
    %1113 = vmatprep.subr.bf16.mxu0 %v1082
    %1114 = vmatpush1.bf16.msra.mxu0 %v1081
    %1115 = vmatprep.subr.bf16.mxu0 %v1084
    %1116 = vmatpush1.bf16.msra.mxu0 %v1083
    %1117 = vmatprep.subr.bf16.mxu0 %v1086
    %1118 = vmatpush1.bf16.msra.mxu0 %v1085
    %1119 = vmatprep.subr.bf16.mxu0 %v1088
    %1120 = vmatpush1.bf16.msra.mxu0 %v1087
    %1121 = vmatprep.subr.bf16.mxu0 0
    %1122 = vmatpush1.bf16.msra.mxu0 0
    %1123 = vmatprep.subr.bf16.mxu0 0
    %1124 = vmatpush1.bf16.msra.mxu0 0
    %1125 = vmatprep.subr.bf16.mxu0 0
    %1126 = vmatpush1.bf16.msra.mxu0 0
    %1127 = vmatprep.subr.bf16.mxu0 0
    %1128 = vmatpush1.bf16.msra.mxu0 0
    %1129 = vmatprep.subr.bf16.mxu0 0
    %1130 = vmatpush1.bf16.msra.mxu0 0
    %1131 = vmatprep.subr.bf16.mxu0 0
    %1132 = vmatpush1.bf16.msra.mxu0 0
    %1133 = vmatprep.subr.bf16.mxu0 0
    %1134 = vmatpush1.bf16.msra.mxu0 0
    %1135 = vmatprep.subr.bf16.mxu0 0
    %1136 = vmatpush1.bf16.msra.mxu0 0
    %1137 = vmatprep.mubr.bf16.mxu0 0
    %1138 = vmatmul.mubr.bf16.gmra.mrb[0].mxu0 %v996
    %v1139 = vpop.f32.mrb[0].mxu0
    %v1140 = vadd.f32 %v1018, %v1139
    %v1141 = vpop.f32.mrb[0].mxu0
    %v1142 = vadd.f32 %v1022, %v1141
    %v1143 = vpop.f32.mrb[0].mxu0
    %v1144 = vpop.f32.mrb[0].mxu0
    %1145 = vdwg.mxu0
    %v1146 = vmax.f32 %v1140, 0.0
    %v1147 = vmax.f32 %v1142, 0.0
    %v1148 = vpack.c.bf16 %v1146, %v1146
    %v1149 = vpack.c.bf16 %v1147, %v1147
    %v1150 = vld [vmem:[%s7] sm:$0xff]
    %v1151 = vld [vmem:[%s7 + $0x8] sm:$0xff]
    %v1152 = vld [vmem:[%s7 + $0x10] sm:$0xff]
    %v1153 = vld [vmem:[%s7 + $0x18] sm:$0xf]
    %v1154 = vld [vmem:[%s7 + $0x1c] sm:$0xff]
    %v1155 = vld [vmem:[%s7 + $0x24] sm:$0xff]
    %v1156 = vld [vmem:[%s7 + $0x2c] sm:$0xff]
    %v1157 = vld [vmem:[%s7 + $0x34] sm:$0xf]
    %v1158 = vld [vmem:[%s7 + $0x38] sm:$0xff]
    %v1159 = vld [vmem:[%s7 + $0x40] sm:$0xff]
    %v1160 = vld [vmem:[%s7 + $0x48] sm:$0xff]
    %v1161 = vld [vmem:[%s7 + $0x50] sm:$0xf]
    %v1162 = vld [vmem:[%s7 + $0x54] sm:$0xff]
    %v1163 = vld [vmem:[%s7 + $0x5c] sm:$0xff]
    %v1164 = vld [vmem:[%s7 + $0x64] sm:$0xff]
    %v1165 = vld [vmem:[%s7 + $0x6c] sm:$0xf]
    %v1166 = vld [vmem:[%s7 + $0x70] sm:$0xff]
    %v1167 = vld [vmem:[%s7 + $0x78] sm:$0xff]
    %v1168 = vld [vmem:[%s7 + $0x80] sm:$0xff]
    %v1169 = vld [vmem:[%s7 + $0x88] sm:$0xf]
    %v1170 = vld [vmem:[%s7 + $0x8c] sm:$0xff]
    %v1171 = vld [vmem:[%s7 + $0x94] sm:$0xff]
    %v1172 = vld [vmem:[%s7 + $0x9c] sm:$0xff]
    %v1173 = vld [vmem:[%s7 + $0xa4] sm:$0xf]
    %v1174 = vld [vmem:[%s7 + $0xa8] sm:$0xff]
    %v1175 = vld [vmem:[%s7 + $0xb0] sm:$0xff]
    %v1176 = vld [vmem:[%s7 + $0xb8] sm:$0xff]
    %v1177 = vld [vmem:[%s7 + $0xc0] sm:$0xf]
    %v1178 = vld [vmem:[%s7 + $0xc4] sm:$0xff]
    %v1179 = vld [vmem:[%s7 + $0xcc] sm:$0xff]
    %v1180 = vld [vmem:[%s7 + $0xd4] sm:$0xff]
    %v1181 = vld [vmem:[%s7 + $0xdc] sm:$0xf]
    %v1182 = vld [vmem:[%s7 + $0xe0] sm:$0xff]
    %v1183 = vld [vmem:[%s7 + $0xe8] sm:$0xff]
    %v1184 = vld [vmem:[%s7 + $0xf0] sm:$0xff]
    %v1185 = vld [vmem:[%s7 + $0xf8] sm:$0xf]
    %v1186 = vld [vmem:[%s7 + $0xfc] sm:$0xff]
    %v1187 = vld [vmem:[%s7 + $0x104] sm:$0xff]
    %v1188 = vld [vmem:[%s7 + $0x10c] sm:$0xff]
    %v1189 = vld [vmem:[%s7 + $0x114] sm:$0xf]
    %v1190 = vld [vmem:[%s7 + $0x118] sm:$0xff]
    %v1191 = vld [vmem:[%s7 + $0x120] sm:$0xff]
    %v1192 = vld [vmem:[%s7 + $0x128] sm:$0xff]
    %v1193 = vld [vmem:[%s7 + $0x130] sm:$0xf]
    %v1194 = vld [vmem:[%s7 + $0x134] sm:$0xff]
    %v1195 = vld [vmem:[%s7 + $0x13c] sm:$0xff]
    %v1196 = vld [vmem:[%s7 + $0x144] sm:$0xff]
    %v1197 = vld [vmem:[%s7 + $0x14c] sm:$0xf]
    %v1198 = vld [vmem:[%s7 + $0x150] sm:$0xff]
    %v1199 = vld [vmem:[%s7 + $0x158] sm:$0xff]
    %v1200 = vld [vmem:[%s7 + $0x160] sm:$0xff]
    %v1201 = vld [vmem:[%s7 + $0x168] sm:$0xf]
    %v1202 = vld [vmem:[%s7 + $0x16c] sm:$0xff]
    %v1203 = vld [vmem:[%s7 + $0x174] sm:$0xff]
    %v1204 = vld [vmem:[%s7 + $0x17c] sm:$0xff]
    %v1205 = vld [vmem:[%s7 + $0x184] sm:$0xf]
    %v1206 = vld [vmem:[%s7 + $0x188] sm:$0xff]
    %v1207 = vld [vmem:[%s7 + $0x190] sm:$0xff]
    %v1208 = vld [vmem:[%s7 + $0x198] sm:$0xff]
    %v1209 = vld [vmem:[%s7 + $0x1a0] sm:$0xf]
    %v1210 = vld [vmem:[%s7 + $0x1a4] sm:$0xff]
    %v1211 = vld [vmem:[%s7 + $0x1ac] sm:$0xff]
    %v1212 = vld [vmem:[%s7 + $0x1b4] sm:$0xff]
    %v1213 = vld [vmem:[%s7 + $0x1bc] sm:$0xf]
    %v1214 = vld [vmem:[%s7 + $0x1c0] sm:$0xff]
    %v1215 = vld [vmem:[%s7 + $0x1c8] sm:$0xff]
    %v1216 = vld [vmem:[%s7 + $0x1d0] sm:$0xff]
    %v1217 = vld [vmem:[%s7 + $0x1d8] sm:$0xf]
    %v1218 = vld [vmem:[%s7 + $0x1dc] sm:$0xff]
    %v1219 = vld [vmem:[%s7 + $0x1e4] sm:$0xff]
    %v1220 = vld [vmem:[%s7 + $0x1ec] sm:$0xff]
    %v1221 = vld [vmem:[%s7 + $0x1f4] sm:$0xf]
    %v1222 = vld [vmem:[%s7 + $0x1f8] sm:$0xff]
    %v1223 = vld [vmem:[%s7 + $0x200] sm:$0xff]
    %v1224 = vld [vmem:[%s7 + $0x208] sm:$0xff]
    %v1225 = vld [vmem:[%s7 + $0x210] sm:$0xf]
    %v1226 = vld [vmem:[%s7 + $0x214] sm:$0xff]
    %v1227 = vld [vmem:[%s7 + $0x21c] sm:$0xff]
    %v1228 = vld [vmem:[%s7 + $0x224] sm:$0xff]
    %v1229 = vld [vmem:[%s7 + $0x22c] sm:$0xf]
    %v1230 = vld [vmem:[%s7 + $0x230] sm:$0xff]
    %v1231 = vld [vmem:[%s7 + $0x238] sm:$0xff]
    %v1232 = vld [vmem:[%s7 + $0x240] sm:$0xff]
    %v1233 = vld [vmem:[%s7 + $0x248] sm:$0xf]
    %v1234 = vld [vmem:[%s7 + $0x24c] sm:$0xff]
    %v1235 = vld [vmem:[%s7 + $0x254] sm:$0xff]
    %v1236 = vld [vmem:[%s7 + $0x25c] sm:$0xff]
    %v1237 = vld [vmem:[%s7 + $0x264] sm:$0xf]
    %v1238 = vld [vmem:[%s7 + $0x268] sm:$0xff]
    %v1239 = vld [vmem:[%s7 + $0x270] sm:$0xff]
    %v1240 = vld [vmem:[%s7 + $0x278] sm:$0xff]
    %v1241 = vld [vmem:[%s7 + $0x280] sm:$0xf]
    %v1242 = vld [vmem:[%s7 + $0x284] sm:$0xff]
    %v1243 = vld [vmem:[%s7 + $0x28c] sm:$0xff]
    %v1244 = vld [vmem:[%s7 + $0x294] sm:$0xff]
    %v1245 = vld [vmem:[%s7 + $0x29c] sm:$0xf]
    %v1246 = vld [vmem:[%s7 + $0x2a0] sm:$0xff]
    %v1247 = vld [vmem:[%s7 + $0x2a8] sm:$0xff]
    %v1248 = vld [vmem:[%s7 + $0x2b0] sm:$0xff]
    %v1249 = vld [vmem:[%s7 + $0x2b8] sm:$0xf]
    %v1250 = vld [vmem:[%s7 + $0x2bc] sm:$0xff]
    %v1251 = vld [vmem:[%s7 + $0x2c4] sm:$0xff]
    %v1252 = vld [vmem:[%s7 + $0x2cc] sm:$0xff]
    %v1253 = vld [vmem:[%s7 + $0x2d4] sm:$0xf]
    %v1254 = vld [vmem:[%s7 + $0x2d8] sm:$0xff]
    %v1255 = vld [vmem:[%s7 + $0x2e0] sm:$0xff]
    %v1256 = vld [vmem:[%s7 + $0x2e8] sm:$0xff]
    %v1257 = vld [vmem:[%s7 + $0x2f0] sm:$0xf]
    %v1258 = vld [vmem:[%s7 + $0x2f4] sm:$0xff]
    %v1259 = vld [vmem:[%s7 + $0x2fc] sm:$0xff]
    %v1260 = vld [vmem:[%s7 + $0x304] sm:$0xff]
    %v1261 = vld [vmem:[%s7 + $0x30c] sm:$0xf]
    %v1262 = vld [vmem:[%s7 + $0x310] sm:$0xff]
    %v1263 = vld [vmem:[%s7 + $0x318] sm:$0xff]
    %v1264 = vld [vmem:[%s7 + $0x320] sm:$0xff]
    %v1265 = vld [vmem:[%s7 + $0x328] sm:$0xf]
    %v1266 = vld [vmem:[%s7 + $0x32c] sm:$0xff]
    %v1267 = vld [vmem:[%s7 + $0x334] sm:$0xff]
    %v1268 = vld [vmem:[%s7 + $0x33c] sm:$0xff]
    %v1269 = vld [vmem:[%s7 + $0x344] sm:$0xf]
    %v1270 = vld [vmem:[%s7 + $0x348] sm:$0xff]
    %v1271 = vld [vmem:[%s7 + $0x350] sm:$0xff]
    %v1272 = vld [vmem:[%s7 + $0x358] sm:$0xff]
    %v1273 = vld [vmem:[%s7 + $0x360] sm:$0xf]
    %v1274 = vld [vmem:[%s7 + $0x364] sm:$0xff]
    %v1275 = vld [vmem:[%s7 + $0x36c] sm:$0xff]
    %v1276 = vld [vmem:[%s7 + $0x374] sm:$0xff]
    %v1277 = vld [vmem:[%s7 + $0x37c] sm:$0xf]
    %v1278 = vld [vmem:[%s8] sm:$0x7f]
    %v1280 = vlaneseq
    %v1281 = vshrl.u32 %v1280, 7
    %v1282 = vsub.s32 0, %v1281
    %v1283 = vrot.slane %v1278, %v1282
    %v1284 = vlaneseq
    %v1285 = vshrl.u32 %v1284, 7
    %v1286 = vsub.s32 1, %v1285
    %v1287 = vrot.slane %v1278, %v1286
    %v1288 = vlaneseq
    %v1289 = vshrl.u32 %v1288, 7
    %v1290 = vsub.s32 2, %v1289
    %v1291 = vrot.slane %v1278, %v1290
    %v1292 = vlaneseq
    %v1293 = vshrl.u32 %v1292, 7
    %v1294 = vsub.s32 3, %v1293
    %v1295 = vrot.slane %v1278, %v1294
    %v1296 = vlaneseq
    %v1297 = vshrl.u32 %v1296, 7
    %v1298 = vsub.s32 4, %v1297
    %v1299 = vrot.slane %v1278, %v1298
    %v1300 = vlaneseq
    %v1301 = vshrl.u32 %v1300, 7
    %v1302 = vsub.s32 5, %v1301
    %v1303 = vrot.slane %v1278, %v1302
    %v1304 = vlaneseq
    %v1305 = vshrl.u32 %v1304, 7
    %v1306 = vsub.s32 6, %v1305
    %v1307 = vrot.slane %v1278, %v1306
    %v1443 = vunpack.c.l.b16 %v1150
    %v1444 = vunpack.c.h.b16 %v1150
    %v1445 = vunpack.c.l.b16 %v1151
    %v1446 = vunpack.c.h.b16 %v1151
    %v1447 = vunpack.c.l.b16 %v1152
    %v1448 = vunpack.c.h.b16 %v1152
    %v1449 = vunpack.c.l.b16 %v1153
    %v1450 = vunpack.c.l.b16 %v1154
    %v1451 = vunpack.c.h.b16 %v1154
    %v1452 = vunpack.c.l.b16 %v1155
    %v1453 = vunpack.c.h.b16 %v1155
    %v1454 = vunpack.c.l.b16 %v1156
    %v1455 = vunpack.c.h.b16 %v1156
    %v1456 = vunpack.c.l.b16 %v1157
    %v1457 = vunpack.c.l.b16 %v1158
    %v1458 = vunpack.c.h.b16 %v1158
    %v1459 = vunpack.c.l.b16 %v1159
    %v1460 = vunpack.c.h.b16 %v1159
    %v1461 = vunpack.c.l.b16 %v1160
    %v1462 = vunpack.c.h.b16 %v1160
    %v1463 = vunpack.c.l.b16 %v1161
    %v1464 = vunpack.c.l.b16 %v1162
    %v1465 = vunpack.c.h.b16 %v1162
    %v1466 = vunpack.c.l.b16 %v1163
    %v1467 = vunpack.c.h.b16 %v1163
    %v1468 = vunpack.c.l.b16 %v1164
    %v1469 = vunpack.c.h.b16 %v1164
    %v1470 = vunpack.c.l.b16 %v1165
    %v1471 = vunpack.c.l.b16 %v1166
    %v1472 = vunpack.c.h.b16 %v1166
    %v1473 = vunpack.c.l.b16 %v1167
    %v1474 = vunpack.c.h.b16 %v1167
    %v1475 = vunpack.c.l.b16 %v1168
    %v1476 = vunpack.c.h.b16 %v1168
    %v1477 = vunpack.c.l.b16 %v1169
    %v1478 = vunpack.c.l.b16 %v1170
    %v1479 = vunpack.c.h.b16 %v1170
    %v1480 = vunpack.c.l.b16 %v1171
    %v1481 = vunpack.c.h.b16 %v1171
    %v1482 = vunpack.c.l.b16 %v1172
    %v1483 = vunpack.c.h.b16 %v1172
    %v1484 = vunpack.c.l.b16 %v1173
    %v1485 = vunpack.c.l.b16 %v1174
    %v1486 = vunpack.c.h.b16 %v1174
    %v1487 = vunpack.c.l.b16 %v1175
    %v1488 = vunpack.c.h.b16 %v1175
    %v1489 = vunpack.c.l.b16 %v1176
    %v1490 = vunpack.c.h.b16 %v1176
    %v1491 = vunpack.c.l.b16 %v1177
    %v1492 = vunpack.c.l.b16 %v1178
    %v1493 = vunpack.c.h.b16 %v1178
    %v1494 = vunpack.c.l.b16 %v1179
    %v1495 = vunpack.c.h.b16 %v1179
    %v1496 = vunpack.c.l.b16 %v1180
    %v1497 = vunpack.c.h.b16 %v1180
    %v1498 = vunpack.c.l.b16 %v1181
    %v1499 = vunpack.c.l.b16 %v1182
    %v1500 = vunpack.c.h.b16 %v1182
    %v1501 = vunpack.c.l.b16 %v1183
    %v1502 = vunpack.c.h.b16 %v1183
    %v1503 = vunpack.c.l.b16 %v1184
    %v1504 = vunpack.c.h.b16 %v1184
    %v1505 = vunpack.c.l.b16 %v1185
    %v1506 = vunpack.c.l.b16 %v1186
    %v1507 = vunpack.c.h.b16 %v1186
    %v1508 = vunpack.c.l.b16 %v1187
    %v1509 = vunpack.c.h.b16 %v1187
    %v1510 = vunpack.c.l.b16 %v1188
    %v1511 = vunpack.c.h.b16 %v1188
    %v1512 = vunpack.c.l.b16 %v1189
    %v1513 = vunpack.c.l.b16 %v1190
    %v1514 = vunpack.c.h.b16 %v1190
    %v1515 = vunpack.c.l.b16 %v1191
    %v1516 = vunpack.c.h.b16 %v1191
    %v1517 = vunpack.c.l.b16 %v1192
    %v1518 = vunpack.c.h.b16 %v1192
    %v1519 = vunpack.c.l.b16 %v1193
    %v1520 = vunpack.c.l.b16 %v1194
    %v1521 = vunpack.c.h.b16 %v1194
    %v1522 = vunpack.c.l.b16 %v1195
    %v1523 = vunpack.c.h.b16 %v1195
    %v1524 = vunpack.c.l.b16 %v1196
    %v1525 = vunpack.c.h.b16 %v1196
    %v1526 = vunpack.c.l.b16 %v1197
    %v1527 = vunpack.c.l.b16 %v1198
    %v1528 = vunpack.c.h.b16 %v1198
    %v1529 = vunpack.c.l.b16 %v1199
    %v1530 = vunpack.c.h.b16 %v1199
    %v1531 = vunpack.c.l.b16 %v1200
    %v1532 = vunpack.c.h.b16 %v1200
    %v1533 = vunpack.c.l.b16 %v1201
    %v1534 = vunpack.c.l.b16 %v1202
    %v1535 = vunpack.c.h.b16 %v1202
    %v1536 = vunpack.c.l.b16 %v1203
    %v1537 = vunpack.c.h.b16 %v1203
    %v1538 = vunpack.c.l.b16 %v1204
    %v1539 = vunpack.c.h.b16 %v1204
    %v1540 = vunpack.c.l.b16 %v1205
    %v1541 = vunpack.c.l.b16 %v1206
    %v1542 = vunpack.c.h.b16 %v1206
    %v1543 = vunpack.c.l.b16 %v1207
    %v1544 = vunpack.c.h.b16 %v1207
    %v1545 = vunpack.c.l.b16 %v1208
    %v1546 = vunpack.c.h.b16 %v1208
    %v1547 = vunpack.c.l.b16 %v1209
    %v1548 = vunpack.c.l.b16 %v1210
    %v1549 = vunpack.c.h.b16 %v1210
    %v1550 = vunpack.c.l.b16 %v1211
    %v1551 = vunpack.c.h.b16 %v1211
    %v1552 = vunpack.c.l.b16 %v1212
    %v1553 = vunpack.c.h.b16 %v1212
    %v1554 = vunpack.c.l.b16 %v1213
    %v1555 = vunpack.c.l.b16 %v1214
    %v1556 = vunpack.c.h.b16 %v1214
    %v1557 = vunpack.c.l.b16 %v1215
    %v1558 = vunpack.c.h.b16 %v1215
    %v1559 = vunpack.c.l.b16 %v1216
    %v1560 = vunpack.c.h.b16 %v1216
    %v1561 = vunpack.c.l.b16 %v1217
    %v1562 = vunpack.c.l.b16 %v1218
    %v1563 = vunpack.c.h.b16 %v1218
    %v1564 = vunpack.c.l.b16 %v1219
    %v1565 = vunpack.c.h.b16 %v1219
    %v1566 = vunpack.c.l.b16 %v1220
    %v1567 = vunpack.c.h.b16 %v1220
    %v1568 = vunpack.c.l.b16 %v1221
    %v1569 = vunpack.c.l.b16 %v1222
    %v1570 = vunpack.c.h.b16 %v1222
    %v1571 = vunpack.c.l.b16 %v1223
    %v1572 = vunpack.c.h.b16 %v1223
    %v1573 = vunpack.c.l.b16 %v1224
    %v1574 = vunpack.c.h.b16 %v1224
    %v1575 = vunpack.c.l.b16 %v1225
    %v1576 = vunpack.c.l.b16 %v1226
    %v1577 = vunpack.c.h.b16 %v1226
    %v1578 = vunpack.c.l.b16 %v1227
    %v1579 = vunpack.c.h.b16 %v1227
    %v1580 = vunpack.c.l.b16 %v1228
    %v1581 = vunpack.c.h.b16 %v1228
    %v1582 = vunpack.c.l.b16 %v1229
    %v1583 = vunpack.c.l.b16 %v1230
    %v1584 = vunpack.c.h.b16 %v1230
    %v1585 = vunpack.c.l.b16 %v1231
    %v1586 = vunpack.c.h.b16 %v1231
    %v1587 = vunpack.c.l.b16 %v1232
    %v1588 = vunpack.c.h.b16 %v1232
    %v1589 = vunpack.c.l.b16 %v1233
    %v1590 = vunpack.c.l.b16 %v1234
    %v1591 = vunpack.c.h.b16 %v1234
    %v1592 = vunpack.c.l.b16 %v1235
    %v1593 = vunpack.c.h.b16 %v1235
    %v1594 = vunpack.c.l.b16 %v1236
    %v1595 = vunpack.c.h.b16 %v1236
    %v1596 = vunpack.c.l.b16 %v1237
    %v1597 = vunpack.c.l.b16 %v1238
    %v1598 = vunpack.c.h.b16 %v1238
    %v1599 = vunpack.c.l.b16 %v1239
    %v1600 = vunpack.c.h.b16 %v1239
    %v1601 = vunpack.c.l.b16 %v1240
    %v1602 = vunpack.c.h.b16 %v1240
    %v1603 = vunpack.c.l.b16 %v1241
    %v1604 = vunpack.c.l.b16 %v1242
    %v1605 = vunpack.c.h.b16 %v1242
    %v1606 = vunpack.c.l.b16 %v1243
    %v1607 = vunpack.c.h.b16 %v1243
    %v1608 = vunpack.c.l.b16 %v1244
    %v1609 = vunpack.c.h.b16 %v1244
    %v1610 = vunpack.c.l.b16 %v1245
    %v1611 = vunpack.c.l.b16 %v1246
    %v1612 = vunpack.c.h.b16 %v1246
    %v1613 = vunpack.c.l.b16 %v1247
    %v1614 = vunpack.c.h.b16 %v1247
    %v1615 = vunpack.c.l.b16 %v1248
    %v1616 = vunpack.c.h.b16 %v1248
    %v1617 = vunpack.c.l.b16 %v1249
    %v1618 = vunpack.c.l.b16 %v1250
    %v1619 = vunpack.c.h.b16 %v1250
    %v1620 = vunpack.c.l.b16 %v1251
    %v1621 = vunpack.c.h.b16 %v1251
    %v1622 = vunpack.c.l.b16 %v1252
    %v1623 = vunpack.c.h.b16 %v1252
    %v1624 = vunpack.c.l.b16 %v1253
    %v1625 = vunpack.c.l.b16 %v1254
    %v1626 = vunpack.c.h.b16 %v1254
    %v1627 = vunpack.c.l.b16 %v1255
    %v1628 = vunpack.c.h.b16 %v1255
    %v1629 = vunpack.c.l.b16 %v1256
    %v1630 = vunpack.c.h.b16 %v1256
    %v1631 = vunpack.c.l.b16 %v1257
    %v1632 = vunpack.c.l.b16 %v1258
    %v1633 = vunpack.c.h.b16 %v1258
    %v1634 = vunpack.c.l.b16 %v1259
    %v1635 = vunpack.c.h.b16 %v1259
    %v1636 = vunpack.c.l.b16 %v1260
    %v1637 = vunpack.c.h.b16 %v1260
    %v1638 = vunpack.c.l.b16 %v1261
    %v1639 = vunpack.c.l.b16 %v1262
    %v1640 = vunpack.c.h.b16 %v1262
    %v1641 = vunpack.c.l.b16 %v1263
    %v1642 = vunpack.c.h.b16 %v1263
    %v1643 = vunpack.c.l.b16 %v1264
    %v1644 = vunpack.c.h.b16 %v1264
    %v1645 = vunpack.c.l.b16 %v1265
    %v1646 = vunpack.c.l.b16 %v1266
    %v1647 = vunpack.c.h.b16 %v1266
    %v1648 = vunpack.c.l.b16 %v1267
    %v1649 = vunpack.c.h.b16 %v1267
    %v1650 = vunpack.c.l.b16 %v1268
    %v1651 = vunpack.c.h.b16 %v1268
    %v1652 = vunpack.c.l.b16 %v1269
    %v1653 = vunpack.c.l.b16 %v1270
    %v1654 = vunpack.c.h.b16 %v1270
    %v1655 = vunpack.c.l.b16 %v1271
    %v1656 = vunpack.c.h.b16 %v1271
    %v1657 = vunpack.c.l.b16 %v1272
    %v1658 = vunpack.c.h.b16 %v1272
    %v1659 = vunpack.c.l.b16 %v1273
    %v1660 = vunpack.c.l.b16 %v1274
    %v1661 = vunpack.c.h.b16 %v1274
    %v1662 = vunpack.c.l.b16 %v1275
    %v1663 = vunpack.c.h.b16 %v1275
    %v1664 = vunpack.c.l.b16 %v1276
    %v1665 = vunpack.c.h.b16 %v1276
    %v1666 = vunpack.c.l.b16 %v1277
    %v1667 = vpack.c.b16 %v1450, %v1443
    %v1668 = vpack.c.b16 %v1451, %v1444
    %v1669 = vpack.c.b16 %v1452, %v1445
    %v1670 = vpack.c.b16 %v1453, %v1446
    %v1671 = vpack.c.b16 %v1454, %v1447
    %v1672 = vpack.c.b16 %v1455, %v1448
    %v1673 = vpack.c.b16 %v1456, %v1449
    %v1674 = vpack.c.b16 %v1464, %v1457
    %v1675 = vpack.c.b16 %v1465, %v1458
    %v1676 = vpack.c.b16 %v1466, %v1459
    %v1677 = vpack.c.b16 %v1467, %v1460
    %v1678 = vpack.c.b16 %v1468, %v1461
    %v1679 = vpack.c.b16 %v1469, %v1462
    %v1680 = vpack.c.b16 %v1470, %v1463
    %v1681 = vpack.c.b16 %v1478, %v1471
    %v1682 = vpack.c.b16 %v1479, %v1472
    %v1683 = vpack.c.b16 %v1480, %v1473
    %v1684 = vpack.c.b16 %v1481, %v1474
    %v1685 = vpack.c.b16 %v1482, %v1475
    %v1686 = vpack.c.b16 %v1483, %v1476
    %v1687 = vpack.c.b16 %v1484, %v1477
    %v1688 = vpack.c.b16 %v1492, %v1485
    %v1689 = vpack.c.b16 %v1493, %v1486
    %v1690 = vpack.c.b16 %v1494, %v1487
    %v1691 = vpack.c.b16 %v1495, %v1488
    %v1692 = vpack.c.b16 %v1496, %v1489
    %v1693 = vpack.c.b16 %v1497, %v1490
    %v1694 = vpack.c.b16 %v1498, %v1491
    %v1695 = vpack.c.b16 %v1506, %v1499
    %v1696 = vpack.c.b16 %v1507, %v1500
    %v1697 = vpack.c.b16 %v1508, %v1501
    %v1698 = vpack.c.b16 %v1509, %v1502
    %v1699 = vpack.c.b16 %v1510, %v1503
    %v1700 = vpack.c.b16 %v1511, %v1504
    %v1701 = vpack.c.b16 %v1512, %v1505
    %v1702 = vpack.c.b16 %v1520, %v1513
    %v1703 = vpack.c.b16 %v1521, %v1514
    %v1704 = vpack.c.b16 %v1522, %v1515
    %v1705 = vpack.c.b16 %v1523, %v1516
    %v1706 = vpack.c.b16 %v1524, %v1517
    %v1707 = vpack.c.b16 %v1525, %v1518
    %v1708 = vpack.c.b16 %v1526, %v1519
    %v1709 = vpack.c.b16 %v1534, %v1527
    %v1710 = vpack.c.b16 %v1535, %v1528
    %v1711 = vpack.c.b16 %v1536, %v1529
    %v1712 = vpack.c.b16 %v1537, %v1530
    %v1713 = vpack.c.b16 %v1538, %v1531
    %v1714 = vpack.c.b16 %v1539, %v1532
    %v1715 = vpack.c.b16 %v1540, %v1533
    %v1716 = vpack.c.b16 %v1548, %v1541
    %v1717 = vpack.c.b16 %v1549, %v1542
    %v1718 = vpack.c.b16 %v1550, %v1543
    %v1719 = vpack.c.b16 %v1551, %v1544
    %v1720 = vpack.c.b16 %v1552, %v1545
    %v1721 = vpack.c.b16 %v1553, %v1546
    %v1722 = vpack.c.b16 %v1554, %v1547
    %v1723 = vpack.c.b16 %v1562, %v1555
    %v1724 = vpack.c.b16 %v1563, %v1556
    %v1725 = vpack.c.b16 %v1564, %v1557
    %v1726 = vpack.c.b16 %v1565, %v1558
    %v1727 = vpack.c.b16 %v1566, %v1559
    %v1728 = vpack.c.b16 %v1567, %v1560
    %v1729 = vpack.c.b16 %v1568, %v1561
    %v1730 = vpack.c.b16 %v1576, %v1569
    %v1731 = vpack.c.b16 %v1577, %v1570
    %v1732 = vpack.c.b16 %v1578, %v1571
    %v1733 = vpack.c.b16 %v1579, %v1572
    %v1734 = vpack.c.b16 %v1580, %v1573
    %v1735 = vpack.c.b16 %v1581, %v1574
    %v1736 = vpack.c.b16 %v1582, %v1575
    %v1737 = vpack.c.b16 %v1590, %v1583
    %v1738 = vpack.c.b16 %v1591, %v1584
    %v1739 = vpack.c.b16 %v1592, %v1585
    %v1740 = vpack.c.b16 %v1593, %v1586
    %v1741 = vpack.c.b16 %v1594, %v1587
    %v1742 = vpack.c.b16 %v1595, %v1588
    %v1743 = vpack.c.b16 %v1596, %v1589
    %v1744 = vpack.c.b16 %v1604, %v1597
    %v1745 = vpack.c.b16 %v1605, %v1598
    %v1746 = vpack.c.b16 %v1606, %v1599
    %v1747 = vpack.c.b16 %v1607, %v1600
    %v1748 = vpack.c.b16 %v1608, %v1601
    %v1749 = vpack.c.b16 %v1609, %v1602
    %v1750 = vpack.c.b16 %v1610, %v1603
    %v1751 = vpack.c.b16 %v1618, %v1611
    %v1752 = vpack.c.b16 %v1619, %v1612
    %v1753 = vpack.c.b16 %v1620, %v1613
    %v1754 = vpack.c.b16 %v1621, %v1614
    %v1755 = vpack.c.b16 %v1622, %v1615
    %v1756 = vpack.c.b16 %v1623, %v1616
    %v1757 = vpack.c.b16 %v1624, %v1617
    %v1758 = vpack.c.b16 %v1632, %v1625
    %v1759 = vpack.c.b16 %v1633, %v1626
    %v1760 = vpack.c.b16 %v1634, %v1627
    %v1761 = vpack.c.b16 %v1635, %v1628
    %v1762 = vpack.c.b16 %v1636, %v1629
    %v1763 = vpack.c.b16 %v1637, %v1630
    %v1764 = vpack.c.b16 %v1638, %v1631
    %v1765 = vpack.c.b16 %v1646, %v1639
    %v1766 = vpack.c.b16 %v1647, %v1640
    %v1767 = vpack.c.b16 %v1648, %v1641
    %v1768 = vpack.c.b16 %v1649, %v1642
    %v1769 = vpack.c.b16 %v1650, %v1643
    %v1770 = vpack.c.b16 %v1651, %v1644
    %v1771 = vpack.c.b16 %v1652, %v1645
    %v1772 = vpack.c.b16 %v1660, %v1653
    %v1773 = vpack.c.b16 %v1661, %v1654
    %v1774 = vpack.c.b16 %v1662, %v1655
    %v1775 = vpack.c.b16 %v1663, %v1656
    %v1776 = vpack.c.b16 %v1664, %v1657
    %v1777 = vpack.c.b16 %v1665, %v1658
    %v1778 = vpack.c.b16 %v1666, %v1659
    %1891 = vmatprep.subr.bf16.mxu0 %v1668
    %1892 = vmatpush1.bf16.msra.mxu0 %v1667
    %1893 = vmatprep.subr.bf16.mxu0 %v1675
    %1894 = vmatpush1.bf16.msra.mxu0 %v1674
    %1895 = vmatprep.subr.bf16.mxu0 %v1682
    %1896 = vmatpush1.bf16.msra.mxu0 %v1681
    %1897 = vmatprep.subr.bf16.mxu0 %v1689
    %1898 = vmatpush1.bf16.msra.mxu0 %v1688
    %1899 = vmatprep.subr.bf16.mxu0 %v1696
    %1900 = vmatpush1.bf16.msra.mxu0 %v1695
    %1901 = vmatprep.subr.bf16.mxu0 %v1703
    %1902 = vmatpush1.bf16.msra.mxu0 %v1702
    %1903 = vmatprep.subr.bf16.mxu0 %v1710
    %1904 = vmatpush1.bf16.msra.mxu0 %v1709
    %1905 = vmatprep.subr.bf16.mxu0 %v1717
    %1906 = vmatpush1.bf16.msra.mxu0 %v1716
    %1907 = vmatprep.subr.bf16.mxu0 %v1724
    %1908 = vmatpush1.bf16.msra.mxu0 %v1723
    %1909 = vmatprep.subr.bf16.mxu0 %v1731
    %1910 = vmatpush1.bf16.msra.mxu0 %v1730
    %1911 = vmatprep.subr.bf16.mxu0 %v1738
    %1912 = vmatpush1.bf16.msra.mxu0 %v1737
    %1913 = vmatprep.subr.bf16.mxu0 %v1745
    %1914 = vmatpush1.bf16.msra.mxu0 %v1744
    %1915 = vmatprep.subr.bf16.mxu0 %v1752
    %1916 = vmatpush1.bf16.msra.mxu0 %v1751
    %1917 = vmatprep.subr.bf16.mxu0 %v1759
    %1918 = vmatpush1.bf16.msra.mxu0 %v1758
    %1919 = vmatprep.subr.bf16.mxu0 %v1766
    %1920 = vmatpush1.bf16.msra.mxu0 %v1765
    %1921 = vmatprep.subr.bf16.mxu0 %v1773
    %1922 = vmatpush1.bf16.msra.mxu0 %v1772
    %1923 = vmatprep.mubr.bf16.mxu0 %v1149
    %1924 = vmatmul.mubr.bf16.gmra.mrb[0].mxu0 %v1148
    %v1925 = vpop.f32.mrb[0].mxu0
    %v1926 = vadd.f32 %v1283, %v1925
    %v1927 = vpop.f32.mrb[0].mxu0
    %v1928 = vadd.f32 %v1287, %v1927
    %v1929 = vpop.f32.mrb[0].mxu0
    %v1930 = vpop.f32.mrb[0].mxu0
    %1931 = vdwg.mxu0
    %1932 = vmatprep.subr.bf16.mxu0 %v1670
    %1933 = vmatpush1.bf16.msra.mxu0 %v1669
    %1934 = vmatprep.subr.bf16.mxu0 %v1677
    %1935 = vmatpush1.bf16.msra.mxu0 %v1676
    %1936 = vmatprep.subr.bf16.mxu0 %v1684
    %1937 = vmatpush1.bf16.msra.mxu0 %v1683
    %1938 = vmatprep.subr.bf16.mxu0 %v1691
    %1939 = vmatpush1.bf16.msra.mxu0 %v1690
    %1940 = vmatprep.subr.bf16.mxu0 %v1698
    %1941 = vmatpush1.bf16.msra.mxu0 %v1697
    %1942 = vmatprep.subr.bf16.mxu0 %v1705
    %1943 = vmatpush1.bf16.msra.mxu0 %v1704
    %1944 = vmatprep.subr.bf16.mxu0 %v1712
    %1945 = vmatpush1.bf16.msra.mxu0 %v1711
    %1946 = vmatprep.subr.bf16.mxu0 %v1719
    %1947 = vmatpush1.bf16.msra.mxu0 %v1718
    %1948 = vmatprep.subr.bf16.mxu0 %v1726
    %1949 = vmatpush1.bf16.msra.mxu0 %v1725
    %1950 = vmatprep.subr.bf16.mxu0 %v1733
    %1951 = vmatpush1.bf16.msra.mxu0 %v1732
    %1952 = vmatprep.subr.bf16.mxu0 %v1740
    %1953 = vmatpush1.bf16.msra.mxu0 %v1739
    %1954 = vmatprep.subr.bf16.mxu0 %v1747
    %1955 = vmatpush1.bf16.msra.mxu0 %v1746
    %1956 = vmatprep.subr.bf16.mxu0 %v1754
    %1957 = vmatpush1.bf16.msra.mxu0 %v1753
    %1958 = vmatprep.subr.bf16.mxu0 %v1761
    %1959 = vmatpush1.bf16.msra.mxu0 %v1760
    %1960 = vmatprep.subr.bf16.mxu0 %v1768
    %1961 = vmatpush1.bf16.msra.mxu0 %v1767
    %1962 = vmatprep.subr.bf16.mxu0 %v1775
    %1963 = vmatpush1.bf16.msra.mxu0 %v1774
    %1964 = vmatprep.mubr.bf16.mxu0 %v1149
    %1965 = vmatmul.mubr.bf16.gmra.mrb[0].mxu0 %v1148
    %v1966 = vpop.f32.mrb[0].mxu0
    %v1967 = vadd.f32 %v1291, %v1966
    %v1968 = vpop.f32.mrb[0].mxu0
    %v1969 = vadd.f32 %v1295, %v1968
    %v1970 = vpop.f32.mrb[0].mxu0
    %v1971 = vpop.f32.mrb[0].mxu0
    %1972 = vdwg.mxu0
    %1973 = vmatprep.subr.bf16.mxu0 %v1672
    %1974 = vmatpush1.bf16.msra.mxu0 %v1671
    %1975 = vmatprep.subr.bf16.mxu0 %v1679
    %1976 = vmatpush1.bf16.msra.mxu0 %v1678
    %1977 = vmatprep.subr.bf16.mxu0 %v1686
    %1978 = vmatpush1.bf16.msra.mxu0 %v1685
    %1979 = vmatprep.subr.bf16.mxu0 %v1693
    %1980 = vmatpush1.bf16.msra.mxu0 %v1692
    %1981 = vmatprep.subr.bf16.mxu0 %v1700
    %1982 = vmatpush1.bf16.msra.mxu0 %v1699
    %1983 = vmatprep.subr.bf16.mxu0 %v1707
    %1984 = vmatpush1.bf16.msra.mxu0 %v1706
    %1985 = vmatprep.subr.bf16.mxu0 %v1714
    %1986 = vmatpush1.bf16.msra.mxu0 %v1713
    %1987 = vmatprep.subr.bf16.mxu0 %v1721
    %1988 = vmatpush1.bf16.msra.mxu0 %v1720
    %1989 = vmatprep.subr.bf16.mxu0 %v1728
    %1990 = vmatpush1.bf16.msra.mxu0 %v1727
    %1991 = vmatprep.subr.bf16.mxu0 %v1735
    %1992 = vmatpush1.bf16.msra.mxu0 %v1734
    %1993 = vmatprep.subr.bf16.mxu0 %v1742
    %1994 = vmatpush1.bf16.msra.mxu0 %v1741
    %1995 = vmatprep.subr.bf16.mxu0 %v1749
    %1996 = vmatpush1.bf16.msra.mxu0 %v1748
    %1997 = vmatprep.subr.bf16.mxu0 %v1756
    %1998 = vmatpush1.bf16.msra.mxu0 %v1755
    %1999 = vmatprep.subr.bf16.mxu0 %v1763
    %2000 = vmatpush1.bf16.msra.mxu0 %v1762
    %2001 = vmatprep.subr.bf16.mxu0 %v1770
    %2002 = vmatpush1.bf16.msra.mxu0 %v1769
    %2003 = vmatprep.subr.bf16.mxu0 %v1777
    %2004 = vmatpush1.bf16.msra.mxu0 %v1776
    %2005 = vmatprep.mubr.bf16.mxu0 %v1149
    %2006 = vmatmul.mubr.bf16.gmra.mrb[0].mxu0 %v1148
    %v2007 = vpop.f32.mrb[0].mxu0
    %v2008 = vadd.f32 %v1299, %v2007
    %v2009 = vpop.f32.mrb[0].mxu0
    %v2010 = vadd.f32 %v1303, %v2009
    %v2011 = vpop.f32.mrb[0].mxu0
    %v2012 = vpop.f32.mrb[0].mxu0
    %2013 = vdwg.mxu0
    %2014 = vmatprep.subr.bf16.mxu0 0
    %2015 = vmatpush1.bf16.msra.mxu0 %v1673
    %2016 = vmatprep.subr.bf16.mxu0 0
    %2017 = vmatpush1.bf16.msra.mxu0 %v1680
    %2018 = vmatprep.subr.bf16.mxu0 0
    %2019 = vmatpush1.bf16.msra.mxu0 %v1687
    %2020 = vmatprep.subr.bf16.mxu0 0
    %2021 = vmatpush1.bf16.msra.mxu0 %v1694
    %2022 = vmatprep.subr.bf16.mxu0 0
    %2023 = vmatpush1.bf16.msra.mxu0 %v1701
    %2024 = vmatprep.subr.bf16.mxu0 0
    %2025 = vmatpush1.bf16.msra.mxu0 %v1708
    %2026 = vmatprep.subr.bf16.mxu0 0
    %2027 = vmatpush1.bf16.msra.mxu0 %v1715
    %2028 = vmatprep.subr.bf16.mxu0 0
    %2029 = vmatpush1.bf16.msra.mxu0 %v1722
    %2030 = vmatprep.subr.bf16.mxu0 0
    %2031 = vmatpush1.bf16.msra.mxu0 %v1729
    %2032 = vmatprep.subr.bf16.mxu0 0
    %2033 = vmatpush1.bf16.msra.mxu0 %v1736
    %2034 = vmatprep.subr.bf16.mxu0 0
    %2035 = vmatpush1.bf16.msra.mxu0 %v1743
    %2036 = vmatprep.subr.bf16.mxu0 0
    %2037 = vmatpush1.bf16.msra.mxu0 %v1750
    %2038 = vmatprep.subr.bf16.mxu0 0
    %2039 = vmatpush1.bf16.msra.mxu0 %v1757
    %2040 = vmatprep.subr.bf16.mxu0 0
    %2041 = vmatpush1.bf16.msra.mxu0 %v1764
    %2042 = vmatprep.subr.bf16.mxu0 0
    %2043 = vmatpush1.bf16.msra.mxu0 %v1771
    %2044 = vmatprep.subr.bf16.mxu0 0
    %2045 = vmatpush1.bf16.msra.mxu0 %v1778
    %2046 = vmatprep.mubr.bf16.mxu0 %v1149
    %2047 = vmatmul.mubr.bf16.gmra.mrb[0].mxu0 %v1148
    %v2048 = vpop.f32.mrb[0].mxu0
    %v2049 = vadd.f32 %v1307, %v2048
    %v2050 = vpop.f32.mrb[0].mxu0
    %v2051 = vpop.f32.mrb[0].mxu0
    %v2052 = vpop.f32.mrb[0].mxu0
    %2053 = vdwg.mxu0
    %v2054 = vsub.f32 0.0, %v1926
    %v2055 = vsub.f32 0.0, %v1928
    %v2056 = vsub.f32 0.0, %v1967
    %v2057 = vsub.f32 0.0, %v1969
    %v2058 = vsub.f32 0.0, %v2008
    %v2059 = vsub.f32 0.0, %v2010
    %v2060 = vsub.f32 0.0, %v2049
    %v2061 = vmul.f32 %v2054, 1.442695
    %v2062 = vpow.pop %v2061
    %v2063 = vmul.f32 %v2055, 1.442695
    %v2064 = vpow.pop %v2063
    %v2065 = vmul.f32 %v2056, 1.442695
    %v2066 = vpow.pop %v2065
    %v2067 = vmul.f32 %v2057, 1.442695
    %v2068 = vpow.pop %v2067
    %v2069 = vmul.f32 %v2058, 1.442695
    %v2070 = vpow.pop %v2069
    %v2071 = vmul.f32 %v2059, 1.442695
    %v2072 = vpow.pop %v2071
    %v2073 = vmul.f32 %v2060, 1.442695
    %v2074 = vpow.pop %v2073
    %v2075 = vadd.f32 %v2062, 1.0
    %v2076 = vadd.f32 %v2064, 1.0
    %v2077 = vadd.f32 %v2066, 1.0
    %v2078 = vadd.f32 %v2068, 1.0
    %v2079 = vadd.f32 %v2070, 1.0
    %v2080 = vadd.f32 %v2072, 1.0
    %v2081 = vadd.f32 %v2074, 1.0
    %v2082 = vrcp.pop %v2075
    %v2083 = vrcp.pop %v2076
    %v2084 = vrcp.pop %v2077
    %v2085 = vrcp.pop %v2078
    %v2086 = vrcp.pop %v2079
    %v2087 = vrcp.pop %v2080
    %v2088 = vrcp.pop %v2081
    %2089 = vst [vmem:[#allocation2] sm:$0xff] %v2082
    %2090 = vst [vmem:[#allocation2 + $0x8] sm:$0xff] %v2083
    %2091 = vst [vmem:[#allocation2 + $0x10] sm:$0xff] %v2084
    %2092 = vst [vmem:[#allocation2 + $0x18] sm:$0xff] %v2085
    %2093 = vst [vmem:[#allocation2 + $0x20] sm:$0xff] %v2086
    %2094 = vst [vmem:[#allocation2 + $0x28] sm:$0xff] %v2087
    %2095 = vst.msk [vmem:[#allocation2 + $0x30] sm:$0xff] %vm648, %v2088
    // Predicated region
    $region38: #{tpu_custom_call.1} parent=1 // pred_check
      _
    $region39: #{tpu_custom_call.1} parent=1 // pred_check_branch
      %2097 = sbr.rel (0) target = $region41
    $region40: #{tpu_custom_call.1} parent=1 // pred_region
      %s2099 = ssub.s32 896, 896
      %2100 = vsyncadd [#allocation3], %s2099
      %s2102 = sshll.u32 [#allocation2], 4
      %s2103 = int_to_ptr.vmem [resolvable:$true] %s2102
      %2105 = dma.vmem_to_hbm [thread:$0]  %s2103, 896, %s9, [#allocation3]
    $region41: #{tpu_custom_call.1} parent=1 // pred_fallthru
      _
    // Predicated region
    $region42: #{tpu_custom_call.1} parent=1 // pred_check
      _
    $region43: #{tpu_custom_call.1} parent=1 // pred_check_branch
      %2107 = sbr.rel (0) target = $region45
    $region44: #{tpu_custom_call.1} parent=1 // pred_region
      %2108 = dma.done [#allocation3], 896
    $region45: #{tpu_custom_call.1} parent=1 // pred_fallthru
      _
    %2109 = vsyncpa [#allocation3], 1

</llo_original>
